<compile_context>
chip_gen: v7x
topology: tpu7x:2x2x1
jax: 0.10.0
libtpu: 0.0.40
codegen_flags: <defaults>
</compile_context>

<pallas_src>
import numpy as np
import jax
import jax.numpy as jnp
from jax.experimental import pallas as pl
from jax.experimental.pallas import tpu as pltpu

# ----------------------------- sizes ---------------------------------------
B          = 2    # batch
HUMAN_NUM  = 5    # number of humans
ROBOT_DIM  = 9    # robot state length (crowd_nav convention)
HUMAN_DIM  = 5    # human state length
X_DIM      = 32   # config.gcn.X_dim
ACTION_DIM = 2
EMB_HID    = 64   # hidden dim of node-embedding mlps inside the graph model
SCORE_HID  = 256  # score_network = mlp(X_dim + action_dim, [256, 256, 1])
N_NODES    = 1 + HUMAN_NUM
SA_DIM     = X_DIM + ACTION_DIM


# --------------------- rotate(): agent-centric transform -------------------
def rotate(robot_state, human_state):
    """Mirror of Critic.rotate for the 3-D human-state branch (plain JAX glue)."""
    dx = (robot_state[:, :, 5] - robot_state[:, :, 0])[:, None, :]          # [B,1,1]
    dy = (robot_state[:, :, 6] - robot_state[:, :, 1])[:, None, :]          # [B,1,1]
    dg = jnp.sqrt(dx * dx + dy * dy)                                        # [B,1,1]
    rot = jnp.arctan2(dy, dx)
    cos_rot, sin_rot = jnp.cos(rot), jnp.sin(rot)
    transform = jnp.concatenate([cos_rot, -sin_rot, sin_rot, cos_rot],
                                axis=1).reshape(robot_state.shape[0], 2, 2)  # [B,2,2]
    robot_vel = jnp.matmul(robot_state[:, :, 2:4], transform)               # [B,1,2]
    radius_r = robot_state[:, :, 4][:, None, :]
    v_pref = robot_state[:, :, 7][:, None, :]
    target_heading = jnp.zeros_like(radius_r)
    pos_r = jnp.zeros_like(robot_vel)
    cur_heading = jnp.mod(robot_state[:, :, 8][:, None, :] - rot + jnp.pi,
                          2.0 * jnp.pi) - jnp.pi
    new_robot = jnp.concatenate(
        [pos_r, robot_vel, radius_r, dg, target_heading, v_pref, cur_heading],
        axis=2)                                                              # [B,1,9]

    human_pos = jnp.matmul(human_state[:, :, 0:2] - robot_state[:, :, 0:2],
                           transform)                                        # [B,H,2]
    human_vel = jnp.matmul(human_state[:, :, 2:4], transform)                # [B,H,2]
    human_radius = human_state[:, :, 4][:, :, None] + 0.3                    # [B,H,1]
    new_human = jnp.concatenate([human_pos, human_vel, human_radius], axis=2)  # [B,H,5]
    return new_robot, new_human


# -------------------- fused critic kernel (graph + both heads) --------------
def critic_kernel(r_ref, h_ref, a_ref,
                  wr1_ref, br1_ref, wr2_ref, br2_ref,
                  wh1_ref, bh1_ref, wh2_ref, bh2_ref,
                  wa_ref, wg1_ref, wg2_ref,
                  w1x_ref, w1a_ref, b1_ref,
                  s1w2_ref, s1b2_ref, s2w2_ref, s2b2_ref,
                  s1w3_ref, s1b3_ref, s2w3_ref, s2b3_ref,
                  q_ref):
    f32 = jnp.float32
    r = r_ref[...]              # (B, ROBOT_DIM)
    h = h_ref[...]              # (B*H, HUMAN_DIM)
    act = a_ref[...]            # (B, ACTION_DIM)

    def two_layer(x, w1, b1, w2, b2):
        y = jnp.maximum(jnp.dot(x, w1, preferred_element_type=f32) + b1, 0.0)
        return jnp.maximum(jnp.dot(y, w2, preferred_element_type=f32) + b2, 0.0)

    # node-embedding MLPs for the whole batch in one MXU pass each
    re = two_layer(r, wr1_ref[...], br1_ref[...], wr2_ref[...], br2_ref[...])   # (B, X)
    he = two_layer(h, wh1_ref[...], bh1_ref[...], wh2_ref[...], bh2_ref[...])   # (B*H, X)

    wa = wa_ref[...]
    wg1 = wg1_ref[...]
    wg2 = wg2_ref[...]

    # embedded-gaussian attention + 2 GCN layers; static unroll over B (=2)
    emb_rows = []
    for b in range(B):
        Xb = jnp.concatenate(
            [re[b:b + 1, :], he[b * HUMAN_NUM:(b + 1) * HUMAN_NUM, :]], axis=0)   # (N, X)
        XW = jnp.dot(Xb, wa, preferred_element_type=f32)                          # (N, X)
        logits = jax.lax.dot_general(XW, Xb, (((1,), (1,)), ((), ())),
                                     preferred_element_type=f32)                  # (N, N)
        logits = logits - jnp.max(logits, axis=-1, keepdims=True)
        e = jnp.exp(logits)
        A = e / jnp.sum(e, axis=-1, keepdims=True)
        H1 = jnp.maximum(
            jnp.dot(jnp.dot(A, Xb, preferred_element_type=f32), wg1,
                    preferred_element_type=f32), 0.0)
        H2 = jnp.maximum(
            jnp.dot(jnp.dot(A, H1, preferred_element_type=f32), wg2,
                    preferred_element_type=f32), 0.0)
        emb_rows.append(H2[0:1, :])                                               # node 0
    emb = jnp.concatenate(emb_rows, axis=0)                                       # (B, X)

    # fused score heads: [emb | action] concat done implicitly via split weights,
    # q1 head occupies cols [0:256), q2 head cols [256:512) of the fused layer 1.
    h1 = jnp.maximum(
        jnp.dot(emb, w1x_ref[...], preferred_element_type=f32)
        + jnp.dot(act, w1a_ref[...], preferred_element_type=f32)
        + b1_ref[...], 0.0)                                                       # (B, 512)
    h1a = h1[:, :SCORE_HID]
    h1b = h1[:, SCORE_HID:]
    h2a = jnp.maximum(jnp.dot(h1a, s1w2_ref[...], preferred_element_type=f32)
                      + s1b2_ref[...], 0.0)                                       # (B, 256)
    h2b = jnp.maximum(jnp.dot(h1b, s2w2_ref[...], preferred_element_type=f32)
                      + s2b2_ref[...], 0.0)                                       # (B, 256)
    q1 = jnp.dot(h2a, s1w3_ref[...], preferred_element_type=f32) + s1b3_ref[...]  # (B, 1)
    q2 = jnp.dot(h2b, s2w3_ref[...], preferred_element_type=f32) + s2b3_ref[...]  # (B, 1)
    q_ref[...] = jnp.concatenate([q1, q2], axis=1)                                # (B, 2)


def critic_forward(params, robot_state, human_state, action):
    new_r, new_h = rotate(robot_state, human_state)
    r2d = new_r.reshape(B, ROBOT_DIM)
    h2d = new_h.reshape(B * HUMAN_NUM, HUMAN_DIM)

    # fuse q1/q2 first layers: split each w1 into emb-rows / action-rows and
    # concatenate the two heads along the output dim -> (X,512), (A,512), (1,512)
    w1x = jnp.concatenate([params['s1_w1'][:X_DIM], params['s2_w1'][:X_DIM]], axis=1)
    w1a = jnp.concatenate([params['s1_w1'][X_DIM:], params['s2_w1'][X_DIM:]], axis=1)
    b1c = jnp.concatenate([params['s1_b1'], params['s2_b1']], axis=1)

    args = (r2d, h2d, action,
            params['wr1'], params['br1'], params['wr2'], params['br2'],
            params['wh1'], params['bh1'], params['wh2'], params['bh2'],
            params['wa'], params['wg1'], params['wg2'],
            w1x, w1a, b1c,
            params['s1_w2'], params['s1_b2'], params['s2_w2'], params['s2_b2'],
            params['s1_w3'], params['s1_b3'], params['s2_w3'], params['s2_b3'])

    # No grid: everything (weights ~0.6 MiB + activations) is resident in VMEM
    # as single whole-array blocks; one kernel launch for the full forward.
    q = pl.pallas_call(
        critic_kernel,
        out_shape=jax.ShapeDtypeStruct((B, 2), jnp.float32),
    )(*args)
    return q[:, 0:1], q[:, 1:2]


# ----------------------------- parameters -----------------------------------
def init_params(key):
    def dense(k, fan_in, fan_out):
        kw, kb = jax.random.split(k)
        w = jax.random.normal(kw, (fan_in, fan_out), jnp.float32) / jnp.sqrt(
            jnp.float32(fan_in))
        b = jax.random.normal(kb, (1, fan_out), jnp.float32) * 0.01
        return w, b

    keys = jax.random.split(key, 13)
    p = {}
    p['wr1'], p['br1'] = dense(keys[0], ROBOT_DIM, EMB_HID)
    p['wr2'], p['br2'] = dense(keys[1], EMB_HID, X_DIM)
    p['wh1'], p['bh1'] = dense(keys[2], HUMAN_DIM, EMB_HID)
    p['wh2'], p['bh2'] = dense(keys[3], EMB_HID, X_DIM)
    p['wa'] = jax.random.normal(keys[4], (X_DIM, X_DIM), jnp.float32) / jnp.sqrt(
        jnp.float32(X_DIM))
    p['wg1'] = jax.random.normal(keys[5], (X_DIM, X_DIM), jnp.float32) / jnp.sqrt(
        jnp.float32(X_DIM))
    p['wg2'] = jax.random.normal(keys[6], (X_DIM, X_DIM), jnp.float32) / jnp.sqrt(
        jnp.float32(X_DIM))
    # two independent score networks (q1 / q2 heads)
    p['s1_w1'], p['s1_b1'] = dense(keys[7], SA_DIM, SCORE_HID)
    p['s1_w2'], p['s1_b2'] = dense(keys[8], SCORE_HID, SCORE_HID)
    p['s1_w3'], p['s1_b3'] = dense(keys[9], SCORE_HID, 1)
    p['s2_w1'], p['s2_b1'] = dense(keys[10], SA_DIM, SCORE_HID)
    p['s2_w2'], p['s2_b2'] = dense(keys[11], SCORE_HID, SCORE_HID)
    p['s2_w3'], p['s2_b3'] = dense(keys[12], SCORE_HID, 1)
    return p


# ----------------------------- pure-JAX reference ----------------------------
def graph_model_ref(p, new_r, new_h):
    def two_layer(x, w1, b1, w2, b2):
        y = jnp.maximum(x @ w1 + b1, 0.0)
        return jnp.maximum(y @ w2 + b2, 0.0)

    re = two_layer(new_r.reshape(B, ROBOT_DIM),
                   p['wr1'], p['br1'], p['wr2'], p['br2'])               # [B,X]
    he = two_layer(new_h.reshape(B * HUMAN_NUM, HUMAN_DIM),
                   p['wh1'], p['bh1'], p['wh2'], p['bh2']
                   ).reshape(B, HUMAN_NUM, X_DIM)                        # [B,H,X]
    X = jnp.concatenate([re[:, None, :], he], axis=1)                    # [B,N,X]
    logits = jnp.einsum('bnd,de,bme->bnm', X, p['wa'], X)
    A = jax.nn.softmax(logits, axis=-1)
    H1 = jnp.maximum(jnp.einsum('bnm,bmd->bnd', A, X) @ p['wg1'], 0.0)
    H2 = jnp.maximum(jnp.einsum('bnm,bmd->bnd', A, H1) @ p['wg2'], 0.0)
    return H2[:, 0, :]


def score_ref(sa, w1, b1, w2, b2, w3, b3):
    h1 = jnp.maximum(sa @ w1 + b1, 0.0)
    h2 = jnp.maximum(h1 @ w2 + b2, 0.0)
    return h2 @ w3 + b3


def critic_forward_ref(params, robot_state, human_state, action):
    new_r, new_h = rotate(robot_state, human_state)
    emb = graph_model_ref(params, new_r, new_h)
    sa = jnp.concatenate([emb, action], axis=1)
    q1 = score_ref(sa, params['s1_w1'], params['s1_b1'], params['s1_w2'],
                   params['s1_b2'], params['s1_w3'], params['s1_b3'])
    q2 = score_ref(sa, params['s2_w1'], params['s2_b1'], params['s2_w2'],
                   params['s2_b2'], params['s2_w3'], params['s2_b3'])
    return q1, q2


# ------------------------------------ main -----------------------------------
if __name__ == "__main__":
    key = jax.random.PRNGKey(0)
    kp, kr, kh, ka = jax.random.split(key, 4)
    params = init_params(kp)

    robot_state = jax.random.normal(kr, (B, 1, ROBOT_DIM), jnp.float32)
    human_state = jax.random.normal(kh, (B, HUMAN_NUM, HUMAN_DIM), jnp.float32)
    action = jax.random.normal(ka, (B, ACTION_DIM), jnp.float32)

    q1, q2 = jax.jit(critic_forward)(params, robot_state, human_state, action)
    jax.block_until_ready((q1, q2))

    q1_ref, q2_ref = critic_forward_ref(params, robot_state, human_state, action)
    assert q1.shape == (B, 1) and q2.shape == (B, 1)
    np.testing.assert_allclose(np.asarray(q1), np.asarray(q1_ref),
                               rtol=2e-2, atol=2e-2)
    np.testing.assert_allclose(np.asarray(q2), np.asarray(q2_ref),
                               rtol=2e-2, atol=2e-2)
    print("KERNEL_OK")
</pallas_src>

<mosaic_0001>
module attributes {stable_mosaic.version = 11 : i64} {
  func.func @critic_kernel(%arg0: memref<2x9xf32, #tpu.memory_space<vmem>>, %arg1: memref<10x5xf32, #tpu.memory_space<vmem>>, %arg2: memref<2x2xf32, #tpu.memory_space<vmem>>, %arg3: memref<9x64xf32, #tpu.memory_space<vmem>>, %arg4: memref<1x64xf32, #tpu.memory_space<vmem>>, %arg5: memref<64x32xf32, #tpu.memory_space<vmem>>, %arg6: memref<1x32xf32, #tpu.memory_space<vmem>>, %arg7: memref<5x64xf32, #tpu.memory_space<vmem>>, %arg8: memref<1x64xf32, #tpu.memory_space<vmem>>, %arg9: memref<64x32xf32, #tpu.memory_space<vmem>>, %arg10: memref<1x32xf32, #tpu.memory_space<vmem>>, %arg11: memref<32x32xf32, #tpu.memory_space<vmem>>, %arg12: memref<32x32xf32, #tpu.memory_space<vmem>>, %arg13: memref<32x32xf32, #tpu.memory_space<vmem>>, %arg14: memref<32x512xf32, #tpu.memory_space<vmem>>, %arg15: memref<2x512xf32, #tpu.memory_space<vmem>>, %arg16: memref<1x512xf32, #tpu.memory_space<vmem>>, %arg17: memref<256x256xf32, #tpu.memory_space<vmem>>, %arg18: memref<1x256xf32, #tpu.memory_space<vmem>>, %arg19: memref<256x256xf32, #tpu.memory_space<vmem>>, %arg20: memref<1x256xf32, #tpu.memory_space<vmem>>, %arg21: memref<256x1xf32, #tpu.memory_space<vmem>>, %arg22: memref<1x1xf32, #tpu.memory_space<vmem>>, %arg23: memref<256x1xf32, #tpu.memory_space<vmem>>, %arg24: memref<1x1xf32, #tpu.memory_space<vmem>>, %arg25: memref<2x2xf32, #tpu.memory_space<vmem>>) attributes {dimension_semantics = [], scalar_prefetch = 0 : i64, scratch_operands = 0 : i64, tpu.core_type = #tpu.core_type<tc>} {
    %c0 = arith.constant 0 : index
    %c0_0 = arith.constant 0 : index
    %0 = vector.load %arg0[%c0, %c0_0] : memref<2x9xf32, #tpu.memory_space<vmem>>, vector<2x9xf32>
    %c0_1 = arith.constant 0 : index
    %c0_2 = arith.constant 0 : index
    %1 = vector.load %arg1[%c0_1, %c0_2] : memref<10x5xf32, #tpu.memory_space<vmem>>, vector<10x5xf32>
    %c0_3 = arith.constant 0 : index
    %c0_4 = arith.constant 0 : index
    %2 = vector.load %arg2[%c0_3, %c0_4] : memref<2x2xf32, #tpu.memory_space<vmem>>, vector<2x2xf32>
    %c0_5 = arith.constant 0 : index
    %c0_6 = arith.constant 0 : index
    %3 = vector.load %arg3[%c0_5, %c0_6] : memref<9x64xf32, #tpu.memory_space<vmem>>, vector<9x64xf32>
    %c0_7 = arith.constant 0 : index
    %c0_8 = arith.constant 0 : index
    %4 = vector.load %arg4[%c0_7, %c0_8] : memref<1x64xf32, #tpu.memory_space<vmem>>, vector<1x64xf32>
    %c0_9 = arith.constant 0 : index
    %c0_10 = arith.constant 0 : index
    %5 = vector.load %arg5[%c0_9, %c0_10] : memref<64x32xf32, #tpu.memory_space<vmem>>, vector<64x32xf32>
    %c0_11 = arith.constant 0 : index
    %c0_12 = arith.constant 0 : index
    %6 = vector.load %arg6[%c0_11, %c0_12] : memref<1x32xf32, #tpu.memory_space<vmem>>, vector<1x32xf32>
    %cst = arith.constant dense<0.000000e+00> : vector<2x64xf32>
    %7 = tpu.matmul %0, %3, %cst {dimension_numbers = #tpu.dot_dimension_numbers<[1], [0], [0], [1], [0, 0, 1, 1], [], []>} : vector<2x9xf32>, vector<9x64xf32>, vector<2x64xf32> -> vector<2x64xf32>
    %8 = vector.broadcast %4 : vector<1x64xf32> to vector<2x64xf32>
    %9 = arith.addf %7, %8 : vector<2x64xf32>
    %cst_13 = arith.constant 0.000000e+00 : f32
    %10 = vector.broadcast %cst_13 : f32 to vector<2x64xf32>
    %11 = arith.maximumf %9, %10 : vector<2x64xf32>
    %cst_14 = arith.constant dense<0.000000e+00> : vector<2x32xf32>
    %12 = tpu.matmul %11, %5, %cst_14 {dimension_numbers = #tpu.dot_dimension_numbers<[1], [0], [0], [1], [0, 0, 1, 1], [], []>} : vector<2x64xf32>, vector<64x32xf32>, vector<2x32xf32> -> vector<2x32xf32>
    %13 = vector.broadcast %6 : vector<1x32xf32> to vector<2x32xf32>
    %14 = arith.addf %12, %13 : vector<2x32xf32>
    %cst_15 = arith.constant 0.000000e+00 : f32
    %15 = vector.broadcast %cst_15 : f32 to vector<2x32xf32>
    %16 = arith.maximumf %14, %15 : vector<2x32xf32>
    %c0_16 = arith.constant 0 : index
    %c0_17 = arith.constant 0 : index
    %17 = vector.load %arg7[%c0_16, %c0_17] : memref<5x64xf32, #tpu.memory_space<vmem>>, vector<5x64xf32>
    %c0_18 = arith.constant 0 : index
    %c0_19 = arith.constant 0 : index
    %18 = vector.load %arg8[%c0_18, %c0_19] : memref<1x64xf32, #tpu.memory_space<vmem>>, vector<1x64xf32>
    %c0_20 = arith.constant 0 : index
    %c0_21 = arith.constant 0 : index
    %19 = vector.load %arg9[%c0_20, %c0_21] : memref<64x32xf32, #tpu.memory_space<vmem>>, vector<64x32xf32>
    %c0_22 = arith.constant 0 : index
    %c0_23 = arith.constant 0 : index
    %20 = vector.load %arg10[%c0_22, %c0_23] : memref<1x32xf32, #tpu.memory_space<vmem>>, vector<1x32xf32>
    %cst_24 = arith.constant dense<0.000000e+00> : vector<10x64xf32>
    %21 = tpu.matmul %1, %17, %cst_24 {dimension_numbers = #tpu.dot_dimension_numbers<[1], [0], [0], [1], [0, 0, 1, 1], [], []>} : vector<10x5xf32>, vector<5x64xf32>, vector<10x64xf32> -> vector<10x64xf32>
    %22 = vector.broadcast %18 : vector<1x64xf32> to vector<10x64xf32>
    %23 = arith.addf %21, %22 : vector<10x64xf32>
    %cst_25 = arith.constant 0.000000e+00 : f32
    %24 = vector.broadcast %cst_25 : f32 to vector<10x64xf32>
    %25 = arith.maximumf %23, %24 : vector<10x64xf32>
    %cst_26 = arith.constant dense<0.000000e+00> : vector<10x32xf32>
    %26 = tpu.matmul %25, %19, %cst_26 {dimension_numbers = #tpu.dot_dimension_numbers<[1], [0], [0], [1], [0, 0, 1, 1], [], []>} : vector<10x64xf32>, vector<64x32xf32>, vector<10x32xf32> -> vector<10x32xf32>
    %27 = vector.broadcast %20 : vector<1x32xf32> to vector<10x32xf32>
    %28 = arith.addf %26, %27 : vector<10x32xf32>
    %cst_27 = arith.constant 0.000000e+00 : f32
    %29 = vector.broadcast %cst_27 : f32 to vector<10x32xf32>
    %30 = arith.maximumf %28, %29 : vector<10x32xf32>
    %c0_28 = arith.constant 0 : index
    %c0_29 = arith.constant 0 : index
    %31 = vector.load %arg11[%c0_28, %c0_29] : memref<32x32xf32, #tpu.memory_space<vmem>>, vector<32x32xf32>
    %c0_30 = arith.constant 0 : index
    %c0_31 = arith.constant 0 : index
    %32 = vector.load %arg12[%c0_30, %c0_31] : memref<32x32xf32, #tpu.memory_space<vmem>>, vector<32x32xf32>
    %c0_32 = arith.constant 0 : index
    %c0_33 = arith.constant 0 : index
    %33 = vector.load %arg13[%c0_32, %c0_33] : memref<32x32xf32, #tpu.memory_space<vmem>>, vector<32x32xf32>
    %34 = vector.extract_strided_slice %16 {offsets = [0, 0], sizes = [1, 32], strides = [1, 1]} : vector<2x32xf32> to vector<1x32xf32>
    %35 = vector.extract_strided_slice %30 {offsets = [0, 0], sizes = [5, 32], strides = [1, 1]} : vector<10x32xf32> to vector<5x32xf32>
    %36 = tpu.concatenate %34, %35 in 0 : vector<1x32xf32>, vector<5x32xf32> -> vector<6x32xf32>
    %cst_34 = arith.constant dense<0.000000e+00> : vector<6x32xf32>
    %37 = tpu.matmul %36, %31, %cst_34 {dimension_numbers = #tpu.dot_dimension_numbers<[1], [0], [0], [1], [0, 0, 1, 1], [], []>} : vector<6x32xf32>, vector<32x32xf32>, vector<6x32xf32> -> vector<6x32xf32>
    %cst_35 = arith.constant dense<0.000000e+00> : vector<6x6xf32>
    %38 = tpu.matmul %37, %36, %cst_35 {dimension_numbers = #tpu.dot_dimension_numbers<[1], [1], [0], [0], [0, 0, 1, 0], [], []>} : vector<6x32xf32>, vector<6x32xf32>, vector<6x6xf32> -> vector<6x6xf32>
    %cst_36 = arith.constant dense<0xFF800000> : vector<6xf32>
    %39 = vector.multi_reduction <maximumf>, %38, %cst_36 [1] : vector<6x6xf32> to vector<6xf32>
    %40 = vector.shape_cast %39 : vector<6xf32> to vector<6x1xf32>
    %41 = vector.broadcast %40 : vector<6x1xf32> to vector<6x6xf32>
    %42 = arith.subf %38, %41 : vector<6x6xf32>
    %43 = math.exp %42 : vector<6x6xf32>
    %cst_37 = arith.constant dense<0.000000e+00> : vector<6xf32>
    %44 = vector.multi_reduction <add>, %43, %cst_37 [1] : vector<6x6xf32> to vector<6xf32>
    %45 = vector.shape_cast %44 : vector<6xf32> to vector<6x1xf32>
    %46 = vector.broadcast %45 : vector<6x1xf32> to vector<6x6xf32>
    %47 = arith.divf %43, %46 : vector<6x6xf32>
    %cst_38 = arith.constant dense<0.000000e+00> : vector<6x32xf32>
    %48 = tpu.matmul %47, %36, %cst_38 {dimension_numbers = #tpu.dot_dimension_numbers<[1], [0], [0], [1], [0, 0, 1, 1], [], []>} : vector<6x6xf32>, vector<6x32xf32>, vector<6x32xf32> -> vector<6x32xf32>
    %cst_39 = arith.constant dense<0.000000e+00> : vector<6x32xf32>
    %49 = tpu.matmul %48, %32, %cst_39 {dimension_numbers = #tpu.dot_dimension_numbers<[1], [0], [0], [1], [0, 0, 1, 1], [], []>} : vector<6x32xf32>, vector<32x32xf32>, vector<6x32xf32> -> vector<6x32xf32>
    %cst_40 = arith.constant 0.000000e+00 : f32
    %50 = vector.broadcast %cst_40 : f32 to vector<6x32xf32>
    %51 = arith.maximumf %49, %50 : vector<6x32xf32>
    %cst_41 = arith.constant dense<0.000000e+00> : vector<6x32xf32>
    %52 = tpu.matmul %47, %51, %cst_41 {dimension_numbers = #tpu.dot_dimension_numbers<[1], [0], [0], [1], [0, 0, 1, 1], [], []>} : vector<6x6xf32>, vector<6x32xf32>, vector<6x32xf32> -> vector<6x32xf32>
    %cst_42 = arith.constant dense<0.000000e+00> : vector<6x32xf32>
    %53 = tpu.matmul %52, %33, %cst_42 {dimension_numbers = #tpu.dot_dimension_numbers<[1], [0], [0], [1], [0, 0, 1, 1], [], []>} : vector<6x32xf32>, vector<32x32xf32>, vector<6x32xf32> -> vector<6x32xf32>
    %cst_43 = arith.constant 0.000000e+00 : f32
    %54 = vector.broadcast %cst_43 : f32 to vector<6x32xf32>
    %55 = arith.maximumf %53, %54 : vector<6x32xf32>
    %56 = vector.extract_strided_slice %55 {offsets = [0, 0], sizes = [1, 32], strides = [1, 1]} : vector<6x32xf32> to vector<1x32xf32>
    %57 = vector.extract_strided_slice %16 {offsets = [1, 0], sizes = [1, 32], strides = [1, 1]} : vector<2x32xf32> to vector<1x32xf32>
    %58 = vector.extract_strided_slice %30 {offsets = [5, 0], sizes = [5, 32], strides = [1, 1]} : vector<10x32xf32> to vector<5x32xf32>
    %59 = tpu.concatenate %57, %58 in 0 : vector<1x32xf32>, vector<5x32xf32> -> vector<6x32xf32>
    %cst_44 = arith.constant dense<0.000000e+00> : vector<6x32xf32>
    %60 = tpu.matmul %59, %31, %cst_44 {dimension_numbers = #tpu.dot_dimension_numbers<[1], [0], [0], [1], [0, 0, 1, 1], [], []>} : vector<6x32xf32>, vector<32x32xf32>, vector<6x32xf32> -> vector<6x32xf32>
    %cst_45 = arith.constant dense<0.000000e+00> : vector<6x6xf32>
    %61 = tpu.matmul %60, %59, %cst_45 {dimension_numbers = #tpu.dot_dimension_numbers<[1], [1], [0], [0], [0, 0, 1, 0], [], []>} : vector<6x32xf32>, vector<6x32xf32>, vector<6x6xf32> -> vector<6x6xf32>
    %cst_46 = arith.constant dense<0xFF800000> : vector<6xf32>
    %62 = vector.multi_reduction <maximumf>, %61, %cst_46 [1] : vector<6x6xf32> to vector<6xf32>
    %63 = vector.shape_cast %62 : vector<6xf32> to vector<6x1xf32>
    %64 = vector.broadcast %63 : vector<6x1xf32> to vector<6x6xf32>
    %65 = arith.subf %61, %64 : vector<6x6xf32>
    %66 = math.exp %65 : vector<6x6xf32>
    %cst_47 = arith.constant dense<0.000000e+00> : vector<6xf32>
    %67 = vector.multi_reduction <add>, %66, %cst_47 [1] : vector<6x6xf32> to vector<6xf32>
    %68 = vector.shape_cast %67 : vector<6xf32> to vector<6x1xf32>
    %69 = vector.broadcast %68 : vector<6x1xf32> to vector<6x6xf32>
    %70 = arith.divf %66, %69 : vector<6x6xf32>
    %cst_48 = arith.constant dense<0.000000e+00> : vector<6x32xf32>
    %71 = tpu.matmul %70, %59, %cst_48 {dimension_numbers = #tpu.dot_dimension_numbers<[1], [0], [0], [1], [0, 0, 1, 1], [], []>} : vector<6x6xf32>, vector<6x32xf32>, vector<6x32xf32> -> vector<6x32xf32>
    %cst_49 = arith.constant dense<0.000000e+00> : vector<6x32xf32>
    %72 = tpu.matmul %71, %32, %cst_49 {dimension_numbers = #tpu.dot_dimension_numbers<[1], [0], [0], [1], [0, 0, 1, 1], [], []>} : vector<6x32xf32>, vector<32x32xf32>, vector<6x32xf32> -> vector<6x32xf32>
    %cst_50 = arith.constant 0.000000e+00 : f32
    %73 = vector.broadcast %cst_50 : f32 to vector<6x32xf32>
    %74 = arith.maximumf %72, %73 : vector<6x32xf32>
    %cst_51 = arith.constant dense<0.000000e+00> : vector<6x32xf32>
    %75 = tpu.matmul %70, %74, %cst_51 {dimension_numbers = #tpu.dot_dimension_numbers<[1], [0], [0], [1], [0, 0, 1, 1], [], []>} : vector<6x6xf32>, vector<6x32xf32>, vector<6x32xf32> -> vector<6x32xf32>
    %cst_52 = arith.constant dense<0.000000e+00> : vector<6x32xf32>
    %76 = tpu.matmul %75, %33, %cst_52 {dimension_numbers = #tpu.dot_dimension_numbers<[1], [0], [0], [1], [0, 0, 1, 1], [], []>} : vector<6x32xf32>, vector<32x32xf32>, vector<6x32xf32> -> vector<6x32xf32>
    %cst_53 = arith.constant 0.000000e+00 : f32
    %77 = vector.broadcast %cst_53 : f32 to vector<6x32xf32>
    %78 = arith.maximumf %76, %77 : vector<6x32xf32>
    %79 = vector.extract_strided_slice %78 {offsets = [0, 0], sizes = [1, 32], strides = [1, 1]} : vector<6x32xf32> to vector<1x32xf32>
    %80 = tpu.concatenate %56, %79 in 0 : vector<1x32xf32>, vector<1x32xf32> -> vector<2x32xf32>
    %c0_54 = arith.constant 0 : index
    %c0_55 = arith.constant 0 : index
    %81 = vector.load %arg14[%c0_54, %c0_55] : memref<32x512xf32, #tpu.memory_space<vmem>>, vector<32x512xf32>
    %cst_56 = arith.constant dense<0.000000e+00> : vector<2x512xf32>
    %82 = tpu.matmul %80, %81, %cst_56 {dimension_numbers = #tpu.dot_dimension_numbers<[1], [0], [0], [1], [0, 0, 1, 1], [], []>} : vector<2x32xf32>, vector<32x512xf32>, vector<2x512xf32> -> vector<2x512xf32>
    %c0_57 = arith.constant 0 : index
    %c0_58 = arith.constant 0 : index
    %83 = vector.load %arg15[%c0_57, %c0_58] : memref<2x512xf32, #tpu.memory_space<vmem>>, vector<2x512xf32>
    %cst_59 = arith.constant dense<0.000000e+00> : vector<2x512xf32>
    %84 = tpu.matmul %2, %83, %cst_59 {dimension_numbers = #tpu.dot_dimension_numbers<[1], [0], [0], [1], [0, 0, 1, 1], [], []>} : vector<2x2xf32>, vector<2x512xf32>, vector<2x512xf32> -> vector<2x512xf32>
    %85 = arith.addf %82, %84 : vector<2x512xf32>
    %c0_60 = arith.constant 0 : index
    %c0_61 = arith.constant 0 : index
    %86 = vector.load %arg16[%c0_60, %c0_61] : memref<1x512xf32, #tpu.memory_space<vmem>>, vector<1x512xf32>
    %87 = vector.broadcast %86 : vector<1x512xf32> to vector<2x512xf32>
    %88 = arith.addf %85, %87 : vector<2x512xf32>
    %cst_62 = arith.constant 0.000000e+00 : f32
    %89 = vector.broadcast %cst_62 : f32 to vector<2x512xf32>
    %90 = arith.maximumf %88, %89 : vector<2x512xf32>
    %91 = vector.extract_strided_slice %90 {offsets = [0, 0], sizes = [2, 256], strides = [1, 1]} : vector<2x512xf32> to vector<2x256xf32>
    %92 = vector.extract_strided_slice %90 {offsets = [0, 256], sizes = [2, 256], strides = [1, 1]} : vector<2x512xf32> to vector<2x256xf32>
    %c0_63 = arith.constant 0 : index
    %c0_64 = arith.constant 0 : index
    %93 = vector.load %arg17[%c0_63, %c0_64] : memref<256x256xf32, #tpu.memory_space<vmem>>, vector<256x256xf32>
    %cst_65 = arith.constant dense<0.000000e+00> : vector<2x256xf32>
    %94 = tpu.matmul %91, %93, %cst_65 {dimension_numbers = #tpu.dot_dimension_numbers<[1], [0], [0], [1], [0, 0, 1, 1], [], []>} : vector<2x256xf32>, vector<256x256xf32>, vector<2x256xf32> -> vector<2x256xf32>
    %c0_66 = arith.constant 0 : index
    %c0_67 = arith.constant 0 : index
    %95 = vector.load %arg18[%c0_66, %c0_67] : memref<1x256xf32, #tpu.memory_space<vmem>>, vector<1x256xf32>
    %96 = vector.broadcast %95 : vector<1x256xf32> to vector<2x256xf32>
    %97 = arith.addf %94, %96 : vector<2x256xf32>
    %cst_68 = arith.constant 0.000000e+00 : f32
    %98 = vector.broadcast %cst_68 : f32 to vector<2x256xf32>
    %99 = arith.maximumf %97, %98 : vector<2x256xf32>
    %c0_69 = arith.constant 0 : index
    %c0_70 = arith.constant 0 : index
    %100 = vector.load %arg19[%c0_69, %c0_70] : memref<256x256xf32, #tpu.memory_space<vmem>>, vector<256x256xf32>
    %cst_71 = arith.constant dense<0.000000e+00> : vector<2x256xf32>
    %101 = tpu.matmul %92, %100, %cst_71 {dimension_numbers = #tpu.dot_dimension_numbers<[1], [0], [0], [1], [0, 0, 1, 1], [], []>} : vector<2x256xf32>, vector<256x256xf32>, vector<2x256xf32> -> vector<2x256xf32>
    %c0_72 = arith.constant 0 : index
    %c0_73 = arith.constant 0 : index
    %102 = vector.load %arg20[%c0_72, %c0_73] : memref<1x256xf32, #tpu.memory_space<vmem>>, vector<1x256xf32>
    %103 = vector.broadcast %102 : vector<1x256xf32> to vector<2x256xf32>
    %104 = arith.addf %101, %103 : vector<2x256xf32>
    %cst_74 = arith.constant 0.000000e+00 : f32
    %105 = vector.broadcast %cst_74 : f32 to vector<2x256xf32>
    %106 = arith.maximumf %104, %105 : vector<2x256xf32>
    %c0_75 = arith.constant 0 : index
    %c0_76 = arith.constant 0 : index
    %107 = vector.load %arg21[%c0_75, %c0_76] : memref<256x1xf32, #tpu.memory_space<vmem>>, vector<256x1xf32>
    %cst_77 = arith.constant dense<0.000000e+00> : vector<2x1xf32>
    %108 = tpu.matmul %99, %107, %cst_77 {dimension_numbers = #tpu.dot_dimension_numbers<[1], [0], [0], [1], [0, 0, 1, 1], [], []>} : vector<2x256xf32>, vector<256x1xf32>, vector<2x1xf32> -> vector<2x1xf32>
    %c0_78 = arith.constant 0 : index
    %c0_79 = arith.constant 0 : index
    %109 = vector.load %arg22[%c0_78, %c0_79] : memref<1x1xf32, #tpu.memory_space<vmem>>, vector<1x1xf32>
    %110 = vector.broadcast %109 : vector<1x1xf32> to vector<2x1xf32>
    %111 = arith.addf %108, %110 : vector<2x1xf32>
    %c0_80 = arith.constant 0 : index
    %c0_81 = arith.constant 0 : index
    %112 = vector.load %arg23[%c0_80, %c0_81] : memref<256x1xf32, #tpu.memory_space<vmem>>, vector<256x1xf32>
    %cst_82 = arith.constant dense<0.000000e+00> : vector<2x1xf32>
    %113 = tpu.matmul %106, %112, %cst_82 {dimension_numbers = #tpu.dot_dimension_numbers<[1], [0], [0], [1], [0, 0, 1, 1], [], []>} : vector<2x256xf32>, vector<256x1xf32>, vector<2x1xf32> -> vector<2x1xf32>
    %c0_83 = arith.constant 0 : index
    %c0_84 = arith.constant 0 : index
    %114 = vector.load %arg24[%c0_83, %c0_84] : memref<1x1xf32, #tpu.memory_space<vmem>>, vector<1x1xf32>
    %115 = vector.broadcast %114 : vector<1x1xf32> to vector<2x1xf32>
    %116 = arith.addf %113, %115 : vector<2x1xf32>
    %117 = tpu.concatenate %111, %116 in 1 : vector<2x1xf32>, vector<2x1xf32> -> vector<2x2xf32>
    %c0_85 = arith.constant 0 : index
    %c0_86 = arith.constant 0 : index
    %118 = vector.load %arg25[%c0_85, %c0_86] : memref<2x2xf32, #tpu.memory_space<vmem>>, vector<2x2xf32>
    tpu.vector_store %arg25[%c0_85, %c0_86], %117 {strides = array<i32>} : memref<2x2xf32, #tpu.memory_space<vmem>>, vector<2x2xf32>,
    return
  }
}

</mosaic_0001>

<llo_original>
// kernel: critic_forward.1
$region0: #{critic_forward.1}
  #allocation0 [shape = 'u32[]', space=smem, size = 0x4, offset = 0x4, fixed_abs, tag = 'smem constant byte address 0x4 - core index']
  #allocation1 [shape = 'u32[144,128]{1,0:T(1,128)}', space=vmem, size = 0x12000, scoped, tag = 'internal scratch']
  #allocation2 [shape = 'f32[1,1]{1,0:T(1,128)S(1)}', space=vmem, size = 0x200, scoped, tag = 'scoped memory for critic_forward.1']
  #allocation3 [shape = 'f32[1,1]{1,0:T(1,128)S(1)}', space=vmem, size = 0x200, scoped, tag = 'scoped memory for critic_forward.1']
  %s0 = inlined_call_operand.vmem [shape: f32[2,9], index: 0, kind: input, shape index: {}]
  %s1 = inlined_call_operand.vmem [shape: f32[10,5], index: 1, kind: input, shape index: {}]
  %s2 = inlined_call_operand.vmem [shape: f32[2,2], index: 2, kind: input, shape index: {}]
  %s3 = inlined_call_operand.vmem [shape: f32[9,64], index: 3, kind: input, shape index: {}]
  %s4 = inlined_call_operand.vmem [shape: f32[1,64], index: 4, kind: input, shape index: {}]
  %s5 = inlined_call_operand.vmem [shape: f32[64,32], index: 5, kind: input, shape index: {}]
  %s6 = inlined_call_operand.vmem [shape: f32[1,32], index: 6, kind: input, shape index: {}]
  %s7 = inlined_call_operand.vmem [shape: f32[5,64], index: 7, kind: input, shape index: {}]
  %s8 = inlined_call_operand.vmem [shape: f32[1,64], index: 8, kind: input, shape index: {}]
  %s9 = inlined_call_operand.vmem [shape: f32[64,32], index: 9, kind: input, shape index: {}]
  %s10 = inlined_call_operand.vmem [shape: f32[1,32], index: 10, kind: input, shape index: {}]
  %s11 = inlined_call_operand.vmem [shape: f32[32,32], index: 11, kind: input, shape index: {}]
  %s12 = inlined_call_operand.vmem [shape: f32[32,32], index: 12, kind: input, shape index: {}]
  %s13 = inlined_call_operand.vmem [shape: f32[32,32], index: 13, kind: input, shape index: {}]
  %s14 = inlined_call_operand.vmem [shape: f32[32,512], index: 14, kind: input, shape index: {}]
  %s15 = inlined_call_operand.vmem [shape: f32[2,512], index: 15, kind: input, shape index: {}]
  %s16 = inlined_call_operand.vmem [shape: f32[1,512], index: 16, kind: input, shape index: {}]
  %s17 = inlined_call_operand.vmem [shape: f32[256,256], index: 17, kind: input, shape index: {}]
  %s18 = inlined_call_operand.vmem [shape: f32[1,256], index: 18, kind: input, shape index: {}]
  %s19 = inlined_call_operand.vmem [shape: f32[256,256], index: 19, kind: input, shape index: {}]
  %s20 = inlined_call_operand.vmem [shape: f32[1,256], index: 20, kind: input, shape index: {}]
  %s21 = inlined_call_operand.vmem [shape: f32[256,1], index: 21, kind: input, shape index: {}]
  %s22 = inlined_call_operand.<no memory space> [shape: f32[1,1], index: 22, kind: input, shape index: {}]
  %s23 = inlined_call_operand.vmem [shape: f32[256,1], index: 23, kind: input, shape index: {}]
  %s24 = inlined_call_operand.<no memory space> [shape: f32[1,1], index: 24, kind: input, shape index: {}]
  %s25 = inlined_call_operand.vmem [shape: f32[2,2], index: 25, kind: output, shape index: {}]
  %s26 = sld [smem:[#allocation0]]
  $region110: #{critic_forward.1} parent=0
    _
  %s28 = ssub.s32 1, %s26
  %s29 = scalar_select 0, %s28, %s26
  %v30 = vstv %s22
  %31 = vst [vmem:[#allocation2] sm:$0x1] %v30
  %v32 = vstv %s24
  %33 = vst [vmem:[#allocation3] sm:$0x1] %v32
  // Predicated region
  $region2: #{critic_forward.1} parent=0 // pred_check
    _
  $region3: #{critic_forward.1} parent=0 // pred_check_branch
    %35 = sbr.rel (0) target = $region5
  $region4: #{critic_forward.1} parent=0 // pred_region
    _
  $region5: #{critic_forward.1} parent=0 // pred_fallthru
    _
  // Predicated region
  $region6: #{critic_forward.1} parent=0 // pred_check
    _
  $region7: #{critic_forward.1} parent=0 // pred_check_branch
    %37 = sbr.rel (0) target = $region9
  $region8: #{critic_forward.1} parent=0 // pred_region
    _
  $region9: #{critic_forward.1} parent=0 // pred_fallthru
    _
  // Predicated region
  $region10: #{critic_forward.1} parent=0 // pred_check
    _
  $region11: #{critic_forward.1} parent=0 // pred_check_branch
    %39 = sbr.rel (0) target = $region13
  $region12: #{critic_forward.1} parent=0 // pred_region
    _
  $region13: #{critic_forward.1} parent=0 // pred_fallthru
    _
  // Predicated region
  $region14: #{critic_forward.1} parent=0 // pred_check
    _
  $region15: #{critic_forward.1} parent=0 // pred_check_branch
    %41 = sbr.rel (0) target = $region17
  $region16: #{critic_forward.1} parent=0 // pred_region
    _
  $region17: #{critic_forward.1} parent=0 // pred_fallthru
    _
  // Predicated region
  $region18: #{critic_forward.1} parent=0 // pred_check
    _
  $region19: #{critic_forward.1} parent=0 // pred_check_branch
    %43 = sbr.rel (0) target = $region21
  $region20: #{critic_forward.1} parent=0 // pred_region
    _
  $region21: #{critic_forward.1} parent=0 // pred_fallthru
    _
  // Predicated region
  $region22: #{critic_forward.1} parent=0 // pred_check
    _
  $region23: #{critic_forward.1} parent=0 // pred_check_branch
    %45 = sbr.rel (0) target = $region25
  $region24: #{critic_forward.1} parent=0 // pred_region
    _
  $region25: #{critic_forward.1} parent=0 // pred_fallthru
    _
  // Predicated region
  $region26: #{critic_forward.1} parent=0 // pred_check
    _
  $region27: #{critic_forward.1} parent=0 // pred_check_branch
    %47 = sbr.rel (0) target = $region29
  $region28: #{critic_forward.1} parent=0 // pred_region
    _
  $region29: #{critic_forward.1} parent=0 // pred_fallthru
    _
  // Predicated region
  $region30: #{critic_forward.1} parent=0 // pred_check
    _
  $region31: #{critic_forward.1} parent=0 // pred_check_branch
    %49 = sbr.rel (0) target = $region33
  $region32: #{critic_forward.1} parent=0 // pred_region
    _
  $region33: #{critic_forward.1} parent=0 // pred_fallthru
    _
  // Predicated region
  $region34: #{critic_forward.1} parent=0 // pred_check
    _
  $region35: #{critic_forward.1} parent=0 // pred_check_branch
    %51 = sbr.rel (0) target = $region37
  $region36: #{critic_forward.1} parent=0 // pred_region
    _
  $region37: #{critic_forward.1} parent=0 // pred_fallthru
    _
  // Predicated region
  $region38: #{critic_forward.1} parent=0 // pred_check
    _
  $region39: #{critic_forward.1} parent=0 // pred_check_branch
    %53 = sbr.rel (0) target = $region41
  $region40: #{critic_forward.1} parent=0 // pred_region
    _
  $region41: #{critic_forward.1} parent=0 // pred_fallthru
    _
  // Predicated region
  $region42: #{critic_forward.1} parent=0 // pred_check
    _
  $region43: #{critic_forward.1} parent=0 // pred_check_branch
    %55 = sbr.rel (0) target = $region45
  $region44: #{critic_forward.1} parent=0 // pred_region
    _
  $region45: #{critic_forward.1} parent=0 // pred_fallthru
    _
  // Predicated region
  $region46: #{critic_forward.1} parent=0 // pred_check
    _
  $region47: #{critic_forward.1} parent=0 // pred_check_branch
    %57 = sbr.rel (0) target = $region49
  $region48: #{critic_forward.1} parent=0 // pred_region
    _
  $region49: #{critic_forward.1} parent=0 // pred_fallthru
    _
  // Predicated region
  $region50: #{critic_forward.1} parent=0 // pred_check
    _
  $region51: #{critic_forward.1} parent=0 // pred_check_branch
    %59 = sbr.rel (0) target = $region53
  $region52: #{critic_forward.1} parent=0 // pred_region
    _
  $region53: #{critic_forward.1} parent=0 // pred_fallthru
    _
  // Predicated region
  $region54: #{critic_forward.1} parent=0 // pred_check
    _
  $region55: #{critic_forward.1} parent=0 // pred_check_branch
    %61 = sbr.rel (0) target = $region57
  $region56: #{critic_forward.1} parent=0 // pred_region
    _
  $region57: #{critic_forward.1} parent=0 // pred_fallthru
    _
  // Predicated region
  $region58: #{critic_forward.1} parent=0 // pred_check
    _
  $region59: #{critic_forward.1} parent=0 // pred_check_branch
    %63 = sbr.rel (0) target = $region61
  $region60: #{critic_forward.1} parent=0 // pred_region
    _
  $region61: #{critic_forward.1} parent=0 // pred_fallthru
    _
  // Predicated region
  $region62: #{critic_forward.1} parent=0 // pred_check
    _
  $region63: #{critic_forward.1} parent=0 // pred_check_branch
    %65 = sbr.rel (0) target = $region65
  $region64: #{critic_forward.1} parent=0 // pred_region
    _
  $region65: #{critic_forward.1} parent=0 // pred_fallthru
    _
  // Predicated region
  $region66: #{critic_forward.1} parent=0 // pred_check
    _
  $region67: #{critic_forward.1} parent=0 // pred_check_branch
    %67 = sbr.rel (0) target = $region69
  $region68: #{critic_forward.1} parent=0 // pred_region
    _
  $region69: #{critic_forward.1} parent=0 // pred_fallthru
    _
  // Predicated region
  $region70: #{critic_forward.1} parent=0 // pred_check
    _
  $region71: #{critic_forward.1} parent=0 // pred_check_branch
    %69 = sbr.rel (0) target = $region73
  $region72: #{critic_forward.1} parent=0 // pred_region
    _
  $region73: #{critic_forward.1} parent=0 // pred_fallthru
    _
  // Predicated region
  $region74: #{critic_forward.1} parent=0 // pred_check
    _
  $region75: #{critic_forward.1} parent=0 // pred_check_branch
    %71 = sbr.rel (0) target = $region77
  $region76: #{critic_forward.1} parent=0 // pred_region
    _
  $region77: #{critic_forward.1} parent=0 // pred_fallthru
    _
  // Predicated region
  $region78: #{critic_forward.1} parent=0 // pred_check
    _
  $region79: #{critic_forward.1} parent=0 // pred_check_branch
    %73 = sbr.rel (0) target = $region81
  $region80: #{critic_forward.1} parent=0 // pred_region
    _
  $region81: #{critic_forward.1} parent=0 // pred_fallthru
    _
  // Predicated region
  $region82: #{critic_forward.1} parent=0 // pred_check
    _
  $region83: #{critic_forward.1} parent=0 // pred_check_branch
    %75 = sbr.rel (0) target = $region85
  $region84: #{critic_forward.1} parent=0 // pred_region
    _
  $region85: #{critic_forward.1} parent=0 // pred_fallthru
    _
  // Predicated region
  $region86: #{critic_forward.1} parent=0 // pred_check
    _
  $region87: #{critic_forward.1} parent=0 // pred_check_branch
    %77 = sbr.rel (0) target = $region89
  $region88: #{critic_forward.1} parent=0 // pred_region
    _
  $region89: #{critic_forward.1} parent=0 // pred_fallthru
    _
  // Predicated region
  $region90: #{critic_forward.1} parent=0 // pred_check
    _
  $region91: #{critic_forward.1} parent=0 // pred_check_branch
    %79 = sbr.rel (0) target = $region93
  $region92: #{critic_forward.1} parent=0 // pred_region
    _
  $region93: #{critic_forward.1} parent=0 // pred_fallthru
    _
  // Predicated region
  $region94: #{critic_forward.1} parent=0 // pred_check
    _
  $region95: #{critic_forward.1} parent=0 // pred_check_branch
    %81 = sbr.rel (0) target = $region97
  $region96: #{critic_forward.1} parent=0 // pred_region
    _
  $region97: #{critic_forward.1} parent=0 // pred_fallthru
    _
  // Predicated region
  $region98: #{critic_forward.1} parent=0 // pred_check
    _
  $region99: #{critic_forward.1} parent=0 // pred_check_branch
    %83 = sbr.rel (0) target = $region101
  $region100: #{critic_forward.1} parent=0 // pred_region
    _
  $region101: #{critic_forward.1} parent=0 // pred_fallthru
    _
  %v84 = vld [vmem:[%s0] sm:$0x3]
  %v85 = vld [vmem:[%s1] sm:$0xff]
  %v86 = vld [vmem:[%s1 + $0x8] sm:$0x3]
  %v87 = vld [vmem:[%s2] sm:$0x3]
  %v88 = vld [vmem:[%s3] sm:$0xff]
  %v89 = vld [vmem:[%s3 + $0x8] sm:$0x1]
  %v90 = vld [vmem:[%s4] sm:$0x1]
  %v91 = vld [vmem:[%s5] sm:$0xff]
  %v92 = vld [vmem:[%s5 + $0x8] sm:$0xff]
  %v93 = vld [vmem:[%s5 + $0x10] sm:$0xff]
  %v94 = vld [vmem:[%s5 + $0x18] sm:$0xff]
  %v95 = vld [vmem:[%s5 + $0x20] sm:$0xff]
  %v96 = vld [vmem:[%s5 + $0x28] sm:$0xff]
  %v97 = vld [vmem:[%s5 + $0x30] sm:$0xff]
  %v98 = vld [vmem:[%s5 + $0x38] sm:$0xff]
  %v99 = vld [vmem:[%s6] sm:$0x1]
  %v101 = vlaneseq
  %v102 = vshrl.u32 %v101, 7
  %v103 = vsub.s32 0, %v102
  %v104 = vrot.slane %v90, %v103
  %vm106 = vcmask 72704
  %v108 = vsel %vm106, %v84, 0
  %vm110 = vcmask 1040384
  %v112 = vsel %vm110, %v89, 0
  %114 = vmatprep.subr.mxu0 0.0
  %115 = vmatpush1.msra.mxu0 %v88
  %116 = vmatprep.subr.mxu0 0.0
  %117 = vmatpush1.msra.mxu0 %v112
  %118 = vmatprep.subr.mxu0 0.0
  %119 = vmatpush1.msra.mxu0 0.0
  %120 = vmatprep.subr.mxu0 0.0
  %121 = vmatpush1.msra.mxu0 0.0
  %122 = vmatprep.subr.mxu0 0.0
  %123 = vmatpush1.msra.mxu0 0.0
  %124 = vmatprep.subr.mxu0 0.0
  %125 = vmatpush1.msra.mxu0 0.0
  %126 = vmatprep.subr.mxu0 0.0
  %127 = vmatpush1.msra.mxu0 0.0
  %128 = vmatprep.subr.mxu0 0.0
  %129 = vmatpush1.msra.mxu0 0.0
  %130 = vmatprep.subr.mxu0 0.0
  %131 = vmatpush1.msra.mxu0 0.0
  %132 = vmatprep.subr.mxu0 0.0
  %133 = vmatpush1.msra.mxu0 0.0
  %134 = vmatprep.subr.mxu0 0.0
  %135 = vmatpush1.msra.mxu0 0.0
  %136 = vmatprep.subr.mxu0 0.0
  %137 = vmatpush1.msra.mxu0 0.0
  %138 = vmatprep.subr.mxu0 0.0
  %139 = vmatpush1.msra.mxu0 0.0
  %140 = vmatprep.subr.mxu0 0.0
  %141 = vmatpush1.msra.mxu0 0.0
  %142 = vmatprep.subr.mxu0 0.0
  %143 = vmatpush1.msra.mxu0 0.0
  %144 = vmatprep.subr.mxu0 0.0
  %145 = vmatpush1.msra.mxu0 0.0
  %146 = vmatprep.subr.mxu0 0.0
  %147 = vmatpush1.msra.mxu0 0.0
  %148 = vmatprep.subr.mxu0 0.0
  %149 = vmatpush1.msra.mxu0 0.0
  %150 = vmatprep.subr.mxu0 0.0
  %151 = vmatpush1.msra.mxu0 0.0
  %152 = vmatprep.subr.mxu0 0.0
  %153 = vmatpush1.msra.mxu0 0.0
  %154 = vmatprep.subr.mxu0 0.0
  %155 = vmatpush1.msra.mxu0 0.0
  %156 = vmatprep.subr.mxu0 0.0
  %157 = vmatpush1.msra.mxu0 0.0
  %158 = vmatprep.subr.mxu0 0.0
  %159 = vmatpush1.msra.mxu0 0.0
  %160 = vmatprep.subr.mxu0 0.0
  %161 = vmatpush1.msra.mxu0 0.0
  %162 = vmatprep.subr.mxu0 0.0
  %163 = vmatpush1.msra.mxu0 0.0
  %164 = vmatprep.subr.mxu0 0.0
  %165 = vmatpush1.msra.mxu0 0.0
  %166 = vmatprep.subr.mxu0 0.0
  %167 = vmatpush1.msra.mxu0 0.0
  %168 = vmatprep.subr.mxu0 0.0
  %169 = vmatpush1.msra.mxu0 0.0
  %170 = vmatprep.subr.mxu0 0.0
  %171 = vmatpush1.msra.mxu0 0.0
  %172 = vmatprep.subr.mxu0 0.0
  %173 = vmatpush1.msra.mxu0 0.0
  %174 = vmatprep.subr.mxu0 0.0
  %175 = vmatpush1.msra.mxu0 0.0
  %176 = vmatprep.subr.mxu0 0.0
  %177 = vmatpush1.msra.mxu0 0.0
  %178 = vmatprep.mubr.f32.mxu0 0.0
  %179 = vmatmul.mubr.f32.gmra.mrb[0].mxu0 %v108
  %v180 = vpop.f32.mrb[0].mxu0
  %v181 = vadd.f32 %v104, %v180
  %v182 = vpop.f32.mrb[0].mxu0
  %183 = vdwg.mxu0
  %v184 = vmax.f32 %v181, 0.0
  %v186 = vlaneseq
  %v187 = vshrl.u32 %v186, 7
  %v188 = vsub.s32 0, %v187
  %v189 = vrot.slane %v99, %v188
  %vm191 = vcmask 523264
  %v193 = vsel %vm191, %v184, 0
  %195 = vmatprep.subr.mxu0 0.0
  %196 = vmatpush1.msra.mxu0 %v91
  %197 = vmatprep.subr.mxu0 0.0
  %198 = vmatpush1.msra.mxu0 %v92
  %199 = vmatprep.subr.mxu0 0.0
  %200 = vmatpush1.msra.mxu0 %v93
  %201 = vmatprep.subr.mxu0 0.0
  %202 = vmatpush1.msra.mxu0 %v94
  %203 = vmatprep.subr.mxu0 0.0
  %204 = vmatpush1.msra.mxu0 %v95
  %205 = vmatprep.subr.mxu0 0.0
  %206 = vmatpush1.msra.mxu0 %v96
  %207 = vmatprep.subr.mxu0 0.0
  %208 = vmatpush1.msra.mxu0 %v97
  %209 = vmatprep.subr.mxu0 0.0
  %210 = vmatpush1.msra.mxu0 %v98
  %211 = vmatprep.subr.mxu0 0.0
  %212 = vmatpush1.msra.mxu0 0.0
  %213 = vmatprep.subr.mxu0 0.0
  %214 = vmatpush1.msra.mxu0 0.0
  %215 = vmatprep.subr.mxu0 0.0
  %216 = vmatpush1.msra.mxu0 0.0
  %217 = vmatprep.subr.mxu0 0.0
  %218 = vmatpush1.msra.mxu0 0.0
  %219 = vmatprep.subr.mxu0 0.0
  %220 = vmatpush1.msra.mxu0 0.0
  %221 = vmatprep.subr.mxu0 0.0
  %222 = vmatpush1.msra.mxu0 0.0
  %223 = vmatprep.subr.mxu0 0.0
  %224 = vmatpush1.msra.mxu0 0.0
  %225 = vmatprep.subr.mxu0 0.0
  %226 = vmatpush1.msra.mxu0 0.0
  %227 = vmatprep.subr.mxu0 0.0
  %228 = vmatpush1.msra.mxu0 0.0
  %229 = vmatprep.subr.mxu0 0.0
  %230 = vmatpush1.msra.mxu0 0.0
  %231 = vmatprep.subr.mxu0 0.0
  %232 = vmatpush1.msra.mxu0 0.0
  %233 = vmatprep.subr.mxu0 0.0
  %234 = vmatpush1.msra.mxu0 0.0
  %235 = vmatprep.subr.mxu0 0.0
  %236 = vmatpush1.msra.mxu0 0.0
  %237 = vmatprep.subr.mxu0 0.0
  %238 = vmatpush1.msra.mxu0 0.0
  %239 = vmatprep.subr.mxu0 0.0
  %240 = vmatpush1.msra.mxu0 0.0
  %241 = vmatprep.subr.mxu0 0.0
  %242 = vmatpush1.msra.mxu0 0.0
  %243 = vmatprep.subr.mxu0 0.0
  %244 = vmatpush1.msra.mxu0 0.0
  %245 = vmatprep.subr.mxu0 0.0
  %246 = vmatpush1.msra.mxu0 0.0
  %247 = vmatprep.subr.mxu0 0.0
  %248 = vmatpush1.msra.mxu0 0.0
  %249 = vmatprep.subr.mxu0 0.0
  %250 = vmatpush1.msra.mxu0 0.0
  %251 = vmatprep.subr.mxu0 0.0
  %252 = vmatpush1.msra.mxu0 0.0
  %253 = vmatprep.subr.mxu0 0.0
  %254 = vmatpush1.msra.mxu0 0.0
  %255 = vmatprep.subr.mxu0 0.0
  %256 = vmatpush1.msra.mxu0 0.0
  %257 = vmatprep.subr.mxu0 0.0
  %258 = vmatpush1.msra.mxu0 0.0
  %259 = vmatprep.mubr.f32.mxu0 0.0
  %260 = vmatmul.mubr.f32.gmra.mrb[0].mxu0 %v193
  %v261 = vpop.f32.mrb[0].mxu0
  %v262 = vadd.f32 %v189, %v261
  %v263 = vpop.f32.mrb[0].mxu0
  %264 = vdwg.mxu0
  %v265 = vmax.f32 %v262, 0.0
  %v266 = vld [vmem:[%s7] sm:$0x1f]
  %v267 = vld [vmem:[%s8] sm:$0x1]
  %v268 = vld [vmem:[%s9] sm:$0xff]
  %v269 = vld [vmem:[%s9 + $0x8] sm:$0xff]
  %v270 = vld [vmem:[%s9 + $0x10] sm:$0xff]
  %v271 = vld [vmem:[%s9 + $0x18] sm:$0xff]
  %v272 = vld [vmem:[%s9 + $0x20] sm:$0xff]
  %v273 = vld [vmem:[%s9 + $0x28] sm:$0xff]
  %v274 = vld [vmem:[%s9 + $0x30] sm:$0xff]
  %v275 = vld [vmem:[%s9 + $0x38] sm:$0xff]
  %v276 = vld [vmem:[%s10] sm:$0x1]
  %v278 = vlaneseq
  %v279 = vshrl.u32 %v278, 7
  %v280 = vsub.s32 0, %v279
  %v281 = vrot.slane %v267, %v280
  %vm283 = vcmask 39936
  %v285 = vsel %vm283, %v85, 0
  %v288 = vsel %vm283, %v86, 0
  %vm290 = vcmask 1044480
  %v292 = vsel %vm290, %v266, 0
  %294 = vmatprep.subr.mxu0 0.0
  %295 = vmatpush1.msra.mxu0 %v292
  %296 = vmatprep.subr.mxu0 0.0
  %297 = vmatpush1.msra.mxu0 0.0
  %298 = vmatprep.subr.mxu0 0.0
  %299 = vmatpush1.msra.mxu0 0.0
  %300 = vmatprep.subr.mxu0 0.0
  %301 = vmatpush1.msra.mxu0 0.0
  %302 = vmatprep.subr.mxu0 0.0
  %303 = vmatpush1.msra.mxu0 0.0
  %304 = vmatprep.subr.mxu0 0.0
  %305 = vmatpush1.msra.mxu0 0.0
  %306 = vmatprep.subr.mxu0 0.0
  %307 = vmatpush1.msra.mxu0 0.0
  %308 = vmatprep.subr.mxu0 0.0
  %309 = vmatpush1.msra.mxu0 0.0
  %310 = vmatprep.subr.mxu0 0.0
  %311 = vmatpush1.msra.mxu0 0.0
  %312 = vmatprep.subr.mxu0 0.0
  %313 = vmatpush1.msra.mxu0 0.0
  %314 = vmatprep.subr.mxu0 0.0
  %315 = vmatpush1.msra.mxu0 0.0
  %316 = vmatprep.subr.mxu0 0.0
  %317 = vmatpush1.msra.mxu0 0.0
  %318 = vmatprep.subr.mxu0 0.0
  %319 = vmatpush1.msra.mxu0 0.0
  %320 = vmatprep.subr.mxu0 0.0
  %321 = vmatpush1.msra.mxu0 0.0
  %322 = vmatprep.subr.mxu0 0.0
  %323 = vmatpush1.msra.mxu0 0.0
  %324 = vmatprep.subr.mxu0 0.0
  %325 = vmatpush1.msra.mxu0 0.0
  %326 = vmatprep.subr.mxu0 0.0
  %327 = vmatpush1.msra.mxu0 0.0
  %328 = vmatprep.subr.mxu0 0.0
  %329 = vmatpush1.msra.mxu0 0.0
  %330 = vmatprep.subr.mxu0 0.0
  %331 = vmatpush1.msra.mxu0 0.0
  %332 = vmatprep.subr.mxu0 0.0
  %333 = vmatpush1.msra.mxu0 0.0
  %334 = vmatprep.subr.mxu0 0.0
  %335 = vmatpush1.msra.mxu0 0.0
  %336 = vmatprep.subr.mxu0 0.0
  %337 = vmatpush1.msra.mxu0 0.0
  %338 = vmatprep.subr.mxu0 0.0
  %339 = vmatpush1.msra.mxu0 0.0
  %340 = vmatprep.subr.mxu0 0.0
  %341 = vmatpush1.msra.mxu0 0.0
  %342 = vmatprep.subr.mxu0 0.0
  %343 = vmatpush1.msra.mxu0 0.0
  %344 = vmatprep.subr.mxu0 0.0
  %345 = vmatpush1.msra.mxu0 0.0
  %346 = vmatprep.subr.mxu0 0.0
  %347 = vmatpush1.msra.mxu0 0.0
  %348 = vmatprep.subr.mxu0 0.0
  %349 = vmatpush1.msra.mxu0 0.0
  %350 = vmatprep.subr.mxu0 0.0
  %351 = vmatpush1.msra.mxu0 0.0
  %352 = vmatprep.subr.mxu0 0.0
  %353 = vmatpush1.msra.mxu0 0.0
  %354 = vmatprep.subr.mxu0 0.0
  %355 = vmatpush1.msra.mxu0 0.0
  %356 = vmatprep.subr.mxu0 0.0
  %357 = vmatpush1.msra.mxu0 0.0
  %358 = vmatprep.mubr.f32.mxu0 0.0
  %359 = vmatmul.mubr.f32.gmra.mrb[0].mxu0 %v285
  %v360 = vpop.f32.mrb[0].mxu0
  %v361 = vadd.f32 %v281, %v360
  %v362 = vpop.f32.mrb[0].mxu0
  %363 = vmatprep.mubr.f32.mxu0 0.0
  %364 = vmatmul.mubr.f32.gmra.mrb[0].mxu0 %v288
  %v365 = vpop.f32.mrb[0].mxu0
  %v366 = vadd.f32 %v281, %v365
  %v367 = vpop.f32.mrb[0].mxu0
  %368 = vdwg.mxu0
  %v369 = vmax.f32 %v361, 0.0
  %v370 = vmax.f32 %v366, 0.0
  %v372 = vlaneseq
  %v373 = vshrl.u32 %v372, 7
  %v374 = vsub.s32 0, %v373
  %v375 = vrot.slane %v276, %v374
  %v378 = vsel %vm191, %v369, 0
  %v381 = vsel %vm191, %v370, 0
  %383 = vmatprep.subr.mxu0 0.0
  %384 = vmatpush1.msra.mxu0 %v268
  %385 = vmatprep.subr.mxu0 0.0
  %386 = vmatpush1.msra.mxu0 %v269
  %387 = vmatprep.subr.mxu0 0.0
  %388 = vmatpush1.msra.mxu0 %v270
  %389 = vmatprep.subr.mxu0 0.0
  %390 = vmatpush1.msra.mxu0 %v271
  %391 = vmatprep.subr.mxu0 0.0
  %392 = vmatpush1.msra.mxu0 %v272
  %393 = vmatprep.subr.mxu0 0.0
  %394 = vmatpush1.msra.mxu0 %v273
  %395 = vmatprep.subr.mxu0 0.0
  %396 = vmatpush1.msra.mxu0 %v274
  %397 = vmatprep.subr.mxu0 0.0
  %398 = vmatpush1.msra.mxu0 %v275
  %399 = vmatprep.subr.mxu0 0.0
  %400 = vmatpush1.msra.mxu0 0.0
  %401 = vmatprep.subr.mxu0 0.0
  %402 = vmatpush1.msra.mxu0 0.0
  %403 = vmatprep.subr.mxu0 0.0
  %404 = vmatpush1.msra.mxu0 0.0
  %405 = vmatprep.subr.mxu0 0.0
  %406 = vmatpush1.msra.mxu0 0.0
  %407 = vmatprep.subr.mxu0 0.0
  %408 = vmatpush1.msra.mxu0 0.0
  %409 = vmatprep.subr.mxu0 0.0
  %410 = vmatpush1.msra.mxu0 0.0
  %411 = vmatprep.subr.mxu0 0.0
  %412 = vmatpush1.msra.mxu0 0.0
  %413 = vmatprep.subr.mxu0 0.0
  %414 = vmatpush1.msra.mxu0 0.0
  %415 = vmatprep.subr.mxu0 0.0
  %416 = vmatpush1.msra.mxu0 0.0
  %417 = vmatprep.subr.mxu0 0.0
  %418 = vmatpush1.msra.mxu0 0.0
  %419 = vmatprep.subr.mxu0 0.0
  %420 = vmatpush1.msra.mxu0 0.0
  %421 = vmatprep.subr.mxu0 0.0
  %422 = vmatpush1.msra.mxu0 0.0
  %423 = vmatprep.subr.mxu0 0.0
  %424 = vmatpush1.msra.mxu0 0.0
  %425 = vmatprep.subr.mxu0 0.0
  %426 = vmatpush1.msra.mxu0 0.0
  %427 = vmatprep.subr.mxu0 0.0
  %428 = vmatpush1.msra.mxu0 0.0
  %429 = vmatprep.subr.mxu0 0.0
  %430 = vmatpush1.msra.mxu0 0.0
  %431 = vmatprep.subr.mxu0 0.0
  %432 = vmatpush1.msra.mxu0 0.0
  %433 = vmatprep.subr.mxu0 0.0
  %434 = vmatpush1.msra.mxu0 0.0
  %435 = vmatprep.subr.mxu0 0.0
  %436 = vmatpush1.msra.mxu0 0.0
  %437 = vmatprep.subr.mxu0 0.0
  %438 = vmatpush1.msra.mxu0 0.0
  %439 = vmatprep.subr.mxu0 0.0
  %440 = vmatpush1.msra.mxu0 0.0
  %441 = vmatprep.subr.mxu0 0.0
  %442 = vmatpush1.msra.mxu0 0.0
  %443 = vmatprep.subr.mxu0 0.0
  %444 = vmatpush1.msra.mxu0 0.0
  %445 = vmatprep.subr.mxu0 0.0
  %446 = vmatpush1.msra.mxu0 0.0
  %447 = vmatprep.mubr.f32.mxu0 0.0
  %448 = vmatmul.mubr.f32.gmra.mrb[0].mxu0 %v378
  %v449 = vpop.f32.mrb[0].mxu0
  %v450 = vadd.f32 %v375, %v449
  %v451 = vpop.f32.mrb[0].mxu0
  %452 = vmatprep.mubr.f32.mxu0 0.0
  %453 = vmatmul.mubr.f32.gmra.mrb[0].mxu0 %v381
  %v454 = vpop.f32.mrb[0].mxu0
  %v455 = vadd.f32 %v375, %v454
  %v456 = vpop.f32.mrb[0].mxu0
  %457 = vdwg.mxu0
  %v458 = vmax.f32 %v450, 0.0
  %v459 = vmax.f32 %v455, 0.0
  %v460 = vld [vmem:[%s11] sm:$0xff]
  %v461 = vld [vmem:[%s11 + $0x8] sm:$0xff]
  %v462 = vld [vmem:[%s11 + $0x10] sm:$0xff]
  %v463 = vld [vmem:[%s11 + $0x18] sm:$0xff]
  %v464 = vld [vmem:[%s12] sm:$0xff]
  %v465 = vld [vmem:[%s12 + $0x8] sm:$0xff]
  %v466 = vld [vmem:[%s12 + $0x10] sm:$0xff]
  %v467 = vld [vmem:[%s12 + $0x18] sm:$0xff]
  %v468 = vld [vmem:[%s13] sm:$0xff]
  %v469 = vld [vmem:[%s13 + $0x8] sm:$0xff]
  %v470 = vld [vmem:[%s13 + $0x10] sm:$0xff]
  %v471 = vld [vmem:[%s13 + $0x18] sm:$0xff]
  %v473 = vrot.slane %v458, 7
  %v475 = vsel %vm110, %v265, %v473
  %vm476 = vcmask 261120
  %v478 = vsel %vm476, %v475, 0
  %480 = vmatprep.subr.mxu0 0.0
  %481 = vmatpush1.msra.mxu0 %v460
  %482 = vmatprep.subr.mxu0 0.0
  %483 = vmatpush1.msra.mxu0 %v461
  %484 = vmatprep.subr.mxu0 0.0
  %485 = vmatpush1.msra.mxu0 %v462
  %486 = vmatprep.subr.mxu0 0.0
  %487 = vmatpush1.msra.mxu0 %v463
  %488 = vmatprep.subr.mxu0 0.0
  %489 = vmatpush1.msra.mxu0 0.0
  %490 = vmatprep.subr.mxu0 0.0
  %491 = vmatpush1.msra.mxu0 0.0
  %492 = vmatprep.subr.mxu0 0.0
  %493 = vmatpush1.msra.mxu0 0.0
  %494 = vmatprep.subr.mxu0 0.0
  %495 = vmatpush1.msra.mxu0 0.0
  %496 = vmatprep.subr.mxu0 0.0
  %497 = vmatpush1.msra.mxu0 0.0
  %498 = vmatprep.subr.mxu0 0.0
  %499 = vmatpush1.msra.mxu0 0.0
  %500 = vmatprep.subr.mxu0 0.0
  %501 = vmatpush1.msra.mxu0 0.0
  %502 = vmatprep.subr.mxu0 0.0
  %503 = vmatpush1.msra.mxu0 0.0
  %504 = vmatprep.subr.mxu0 0.0
  %505 = vmatpush1.msra.mxu0 0.0
  %506 = vmatprep.subr.mxu0 0.0
  %507 = vmatpush1.msra.mxu0 0.0
  %508 = vmatprep.subr.mxu0 0.0
  %509 = vmatpush1.msra.mxu0 0.0
  %510 = vmatprep.subr.mxu0 0.0
  %511 = vmatpush1.msra.mxu0 0.0
  %512 = vmatprep.subr.mxu0 0.0
  %513 = vmatpush1.msra.mxu0 0.0
  %514 = vmatprep.subr.mxu0 0.0
  %515 = vmatpush1.msra.mxu0 0.0
  %516 = vmatprep.subr.mxu0 0.0
  %517 = vmatpush1.msra.mxu0 0.0
  %518 = vmatprep.subr.mxu0 0.0
  %519 = vmatpush1.msra.mxu0 0.0
  %520 = vmatprep.subr.mxu0 0.0
  %521 = vmatpush1.msra.mxu0 0.0
  %522 = vmatprep.subr.mxu0 0.0
  %523 = vmatpush1.msra.mxu0 0.0
  %524 = vmatprep.subr.mxu0 0.0
  %525 = vmatpush1.msra.mxu0 0.0
  %526 = vmatprep.subr.mxu0 0.0
  %527 = vmatpush1.msra.mxu0 0.0
  %528 = vmatprep.subr.mxu0 0.0
  %529 = vmatpush1.msra.mxu0 0.0
  %530 = vmatprep.subr.mxu0 0.0
  %531 = vmatpush1.msra.mxu0 0.0
  %532 = vmatprep.subr.mxu0 0.0
  %533 = vmatpush1.msra.mxu0 0.0
  %534 = vmatprep.subr.mxu0 0.0
  %535 = vmatpush1.msra.mxu0 0.0
  %536 = vmatprep.subr.mxu0 0.0
  %537 = vmatpush1.msra.mxu0 0.0
  %538 = vmatprep.subr.mxu0 0.0
  %539 = vmatpush1.msra.mxu0 0.0
  %540 = vmatprep.subr.mxu0 0.0
  %541 = vmatpush1.msra.mxu0 0.0
  %542 = vmatprep.subr.mxu0 0.0
  %543 = vmatpush1.msra.mxu0 0.0
  %544 = vmatprep.mubr.f32.mxu0 0.0
  %545 = vmatmul.mubr.f32.gmra.mrb[0].mxu0 %v478
  %v546 = vpop.f32.mrb[0].mxu0
  %v547 = vadd.f32 0.0, %v546
  %v548 = vpop.f32.mrb[0].mxu0
  %549 = vdwg.mxu0
  %v551 = vsel %vm476, %v547, 0
  %553 = vmatprep.subr.mxu0 0.0
  %554 = vmatpush1.xpose.msra.mxu0 %v478
  %555 = vmatprep.subr.mxu0 0.0
  %556 = vmatpush1.xpose.msra.mxu0 0.0
  %557 = vmatprep.subr.mxu0 0.0
  %558 = vmatpush1.xpose.msra.mxu0 0.0
  %559 = vmatprep.subr.mxu0 0.0
  %560 = vmatpush1.xpose.msra.mxu0 0.0
  %561 = vmatprep.subr.mxu0 0.0
  %562 = vmatpush1.xpose.msra.mxu0 0.0
  %563 = vmatprep.subr.mxu0 0.0
  %564 = vmatpush1.xpose.msra.mxu0 0.0
  %565 = vmatprep.subr.mxu0 0.0
  %566 = vmatpush1.xpose.msra.mxu0 0.0
  %567 = vmatprep.subr.mxu0 0.0
  %568 = vmatpush1.xpose.msra.mxu0 0.0
  %569 = vmatprep.subr.mxu0 0.0
  %570 = vmatpush1.xpose.msra.mxu0 0.0
  %571 = vmatprep.subr.mxu0 0.0
  %572 = vmatpush1.xpose.msra.mxu0 0.0
  %573 = vmatprep.subr.mxu0 0.0
  %574 = vmatpush1.xpose.msra.mxu0 0.0
  %575 = vmatprep.subr.mxu0 0.0
  %576 = vmatpush1.xpose.msra.mxu0 0.0
  %577 = vmatprep.subr.mxu0 0.0
  %578 = vmatpush1.xpose.msra.mxu0 0.0
  %579 = vmatprep.subr.mxu0 0.0
  %580 = vmatpush1.xpose.msra.mxu0 0.0
  %581 = vmatprep.subr.mxu0 0.0
  %582 = vmatpush1.xpose.msra.mxu0 0.0
  %583 = vmatprep.subr.mxu0 0.0
  %584 = vmatpush1.xpose.msra.mxu0 0.0
  %585 = vmatprep.subr.mxu0 0.0
  %586 = vmatpush1.xpose.msra.mxu0 0.0
  %587 = vmatprep.subr.mxu0 0.0
  %588 = vmatpush1.xpose.msra.mxu0 0.0
  %589 = vmatprep.subr.mxu0 0.0
  %590 = vmatpush1.xpose.msra.mxu0 0.0
  %591 = vmatprep.subr.mxu0 0.0
  %592 = vmatpush1.xpose.msra.mxu0 0.0
  %593 = vmatprep.subr.mxu0 0.0
  %594 = vmatpush1.xpose.msra.mxu0 0.0
  %595 = vmatprep.subr.mxu0 0.0
  %596 = vmatpush1.xpose.msra.mxu0 0.0
  %597 = vmatprep.subr.mxu0 0.0
  %598 = vmatpush1.xpose.msra.mxu0 0.0
  %599 = vmatprep.subr.mxu0 0.0
  %600 = vmatpush1.xpose.msra.mxu0 0.0
  %601 = vmatprep.subr.mxu0 0.0
  %602 = vmatpush1.xpose.msra.mxu0 0.0
  %603 = vmatprep.subr.mxu0 0.0
  %604 = vmatpush1.xpose.msra.mxu0 0.0
  %605 = vmatprep.subr.mxu0 0.0
  %606 = vmatpush1.xpose.msra.mxu0 0.0
  %607 = vmatprep.subr.mxu0 0.0
  %608 = vmatpush1.xpose.msra.mxu0 0.0
  %609 = vmatprep.subr.mxu0 0.0
  %610 = vmatpush1.xpose.msra.mxu0 0.0
  %611 = vmatprep.subr.mxu0 0.0
  %612 = vmatpush1.xpose.msra.mxu0 0.0
  %613 = vmatprep.subr.mxu0 0.0
  %614 = vmatpush1.xpose.msra.mxu0 0.0
  %615 = vmatprep.subr.mxu0 0.0
  %616 = vmatpush1.xpose.msra.mxu0 0.0
  %617 = vmatprep.mubr.f32.mxu0 0.0
  %618 = vmatmul.mubr.f32.gmra.mrb[0].mxu0 %v551
  %v619 = vpop.f32.mrb[0].mxu0
  %v620 = vadd.f32 0.0, %v619
  %v621 = vpop.f32.mrb[0].mxu0
  %622 = vdwg.mxu0
  %vm623 = vcmask 46080
  %v624 = vsel %vm623, %v620, -inf
  %625 = vmax.xlane.f32.xlu0 %v624
  %v626 = vpop.xlane.xlu0 %625
  %v627 = vsub.f32 %v620, %v626
  %v628 = vmul.f32 %v627, 1.442695
  %v629 = vpow.pop %v628
  %v630 = vsel %vm623, %v629, 0.0
  %631 = vadd.xlane.f32.xlu0 %v630
  %v632 = vpop.xlane.xlu0 %631
  %v633 = vrcp.pop %v632
  %v634 = vmul.f32 %v629, %v633
  %vm635 = vcmask 48128
  %v637 = vsel %vm635, %v634, 0
  %vm639 = vcmask 1045504
  %v640 = vsel %vm639, %v475, 0
  %642 = vmatprep.subr.mxu0 0.0
  %643 = vmatpush1.msra.mxu0 %v640
  %644 = vmatprep.subr.mxu0 0.0
  %645 = vmatpush1.msra.mxu0 0.0
  %646 = vmatprep.subr.mxu0 0.0
  %647 = vmatpush1.msra.mxu0 0.0
  %648 = vmatprep.subr.mxu0 0.0
  %649 = vmatpush1.msra.mxu0 0.0
  %650 = vmatprep.subr.mxu0 0.0
  %651 = vmatpush1.msra.mxu0 0.0
  %652 = vmatprep.subr.mxu0 0.0
  %653 = vmatpush1.msra.mxu0 0.0
  %654 = vmatprep.subr.mxu0 0.0
  %655 = vmatpush1.msra.mxu0 0.0
  %656 = vmatprep.subr.mxu0 0.0
  %657 = vmatpush1.msra.mxu0 0.0
  %658 = vmatprep.subr.mxu0 0.0
  %659 = vmatpush1.msra.mxu0 0.0
  %660 = vmatprep.subr.mxu0 0.0
  %661 = vmatpush1.msra.mxu0 0.0
  %662 = vmatprep.subr.mxu0 0.0
  %663 = vmatpush1.msra.mxu0 0.0
  %664 = vmatprep.subr.mxu0 0.0
  %665 = vmatpush1.msra.mxu0 0.0
  %666 = vmatprep.subr.mxu0 0.0
  %667 = vmatpush1.msra.mxu0 0.0
  %668 = vmatprep.subr.mxu0 0.0
  %669 = vmatpush1.msra.mxu0 0.0
  %670 = vmatprep.subr.mxu0 0.0
  %671 = vmatpush1.msra.mxu0 0.0
  %672 = vmatprep.subr.mxu0 0.0
  %673 = vmatpush1.msra.mxu0 0.0
  %674 = vmatprep.subr.mxu0 0.0
  %675 = vmatpush1.msra.mxu0 0.0
  %676 = vmatprep.subr.mxu0 0.0
  %677 = vmatpush1.msra.mxu0 0.0
  %678 = vmatprep.subr.mxu0 0.0
  %679 = vmatpush1.msra.mxu0 0.0
  %680 = vmatprep.subr.mxu0 0.0
  %681 = vmatpush1.msra.mxu0 0.0
  %682 = vmatprep.subr.mxu0 0.0
  %683 = vmatpush1.msra.mxu0 0.0
  %684 = vmatprep.subr.mxu0 0.0
  %685 = vmatpush1.msra.mxu0 0.0
  %686 = vmatprep.subr.mxu0 0.0
  %687 = vmatpush1.msra.mxu0 0.0
  %688 = vmatprep.subr.mxu0 0.0
  %689 = vmatpush1.msra.mxu0 0.0
  %690 = vmatprep.subr.mxu0 0.0
  %691 = vmatpush1.msra.mxu0 0.0
  %692 = vmatprep.subr.mxu0 0.0
  %693 = vmatpush1.msra.mxu0 0.0
  %694 = vmatprep.subr.mxu0 0.0
  %695 = vmatpush1.msra.mxu0 0.0
  %696 = vmatprep.subr.mxu0 0.0
  %697 = vmatpush1.msra.mxu0 0.0
  %698 = vmatprep.subr.mxu0 0.0
  %699 = vmatpush1.msra.mxu0 0.0
  %700 = vmatprep.subr.mxu0 0.0
  %701 = vmatpush1.msra.mxu0 0.0
  %702 = vmatprep.subr.mxu0 0.0
  %703 = vmatpush1.msra.mxu0 0.0
  %704 = vmatprep.subr.mxu0 0.0
  %705 = vmatpush1.msra.mxu0 0.0
  %706 = vmatprep.mubr.f32.mxu0 0.0
  %707 = vmatmul.mubr.f32.gmra.mrb[0].mxu0 %v637
  %v708 = vpop.f32.mrb[0].mxu0
  %v709 = vadd.f32 0.0, %v708
  %v710 = vpop.f32.mrb[0].mxu0
  %711 = vdwg.mxu0
  %v713 = vsel %vm476, %v709, 0
  %715 = vmatprep.subr.mxu0 0.0
  %716 = vmatpush1.msra.mxu0 %v464
  %717 = vmatprep.subr.mxu0 0.0
  %718 = vmatpush1.msra.mxu0 %v465
  %719 = vmatprep.subr.mxu0 0.0
  %720 = vmatpush1.msra.mxu0 %v466
  %721 = vmatprep.subr.mxu0 0.0
  %722 = vmatpush1.msra.mxu0 %v467
  %723 = vmatprep.subr.mxu0 0.0
  %724 = vmatpush1.msra.mxu0 0.0
  %725 = vmatprep.subr.mxu0 0.0
  %726 = vmatpush1.msra.mxu0 0.0
  %727 = vmatprep.subr.mxu0 0.0
  %728 = vmatpush1.msra.mxu0 0.0
  %729 = vmatprep.subr.mxu0 0.0
  %730 = vmatpush1.msra.mxu0 0.0
  %731 = vmatprep.subr.mxu0 0.0
  %732 = vmatpush1.msra.mxu0 0.0
  %733 = vmatprep.subr.mxu0 0.0
  %734 = vmatpush1.msra.mxu0 0.0
  %735 = vmatprep.subr.mxu0 0.0
  %736 = vmatpush1.msra.mxu0 0.0
  %737 = vmatprep.subr.mxu0 0.0
  %738 = vmatpush1.msra.mxu0 0.0
  %739 = vmatprep.subr.mxu0 0.0
  %740 = vmatpush1.msra.mxu0 0.0
  %741 = vmatprep.subr.mxu0 0.0
  %742 = vmatpush1.msra.mxu0 0.0
  %743 = vmatprep.subr.mxu0 0.0
  %744 = vmatpush1.msra.mxu0 0.0
  %745 = vmatprep.subr.mxu0 0.0
  %746 = vmatpush1.msra.mxu0 0.0
  %747 = vmatprep.subr.mxu0 0.0
  %748 = vmatpush1.msra.mxu0 0.0
  %749 = vmatprep.subr.mxu0 0.0
  %750 = vmatpush1.msra.mxu0 0.0
  %751 = vmatprep.subr.mxu0 0.0
  %752 = vmatpush1.msra.mxu0 0.0
  %753 = vmatprep.subr.mxu0 0.0
  %754 = vmatpush1.msra.mxu0 0.0
  %755 = vmatprep.subr.mxu0 0.0
  %756 = vmatpush1.msra.mxu0 0.0
  %757 = vmatprep.subr.mxu0 0.0
  %758 = vmatpush1.msra.mxu0 0.0
  %759 = vmatprep.subr.mxu0 0.0
  %760 = vmatpush1.msra.mxu0 0.0
  %761 = vmatprep.subr.mxu0 0.0
  %762 = vmatpush1.msra.mxu0 0.0
  %763 = vmatprep.subr.mxu0 0.0
  %764 = vmatpush1.msra.mxu0 0.0
  %765 = vmatprep.subr.mxu0 0.0
  %766 = vmatpush1.msra.mxu0 0.0
  %767 = vmatprep.subr.mxu0 0.0
  %768 = vmatpush1.msra.mxu0 0.0
  %769 = vmatprep.subr.mxu0 0.0
  %770 = vmatpush1.msra.mxu0 0.0
  %771 = vmatprep.subr.mxu0 0.0
  %772 = vmatpush1.msra.mxu0 0.0
  %773 = vmatprep.subr.mxu0 0.0
  %774 = vmatpush1.msra.mxu0 0.0
  %775 = vmatprep.subr.mxu0 0.0
  %776 = vmatpush1.msra.mxu0 0.0
  %777 = vmatprep.subr.mxu0 0.0
  %778 = vmatpush1.msra.mxu0 0.0
  %779 = vmatprep.mubr.f32.mxu0 0.0
  %780 = vmatmul.mubr.f32.gmra.mrb[0].mxu0 %v713
  %v781 = vpop.f32.mrb[0].mxu0
  %v782 = vadd.f32 0.0, %v781
  %v783 = vpop.f32.mrb[0].mxu0
  %784 = vdwg.mxu0
  %v785 = vmax.f32 %v782, 0.0
  %v787 = vsel %vm639, %v785, 0
  %789 = vmatprep.subr.mxu0 0.0
  %790 = vmatpush1.msra.mxu0 %v787
  %791 = vmatprep.subr.mxu0 0.0
  %792 = vmatpush1.msra.mxu0 0.0
  %793 = vmatprep.subr.mxu0 0.0
  %794 = vmatpush1.msra.mxu0 0.0
  %795 = vmatprep.subr.mxu0 0.0
  %796 = vmatpush1.msra.mxu0 0.0
  %797 = vmatprep.subr.mxu0 0.0
  %798 = vmatpush1.msra.mxu0 0.0
  %799 = vmatprep.subr.mxu0 0.0
  %800 = vmatpush1.msra.mxu0 0.0
  %801 = vmatprep.subr.mxu0 0.0
  %802 = vmatpush1.msra.mxu0 0.0
  %803 = vmatprep.subr.mxu0 0.0
  %804 = vmatpush1.msra.mxu0 0.0
  %805 = vmatprep.subr.mxu0 0.0
  %806 = vmatpush1.msra.mxu0 0.0
  %807 = vmatprep.subr.mxu0 0.0
  %808 = vmatpush1.msra.mxu0 0.0
  %809 = vmatprep.subr.mxu0 0.0
  %810 = vmatpush1.msra.mxu0 0.0
  %811 = vmatprep.subr.mxu0 0.0
  %812 = vmatpush1.msra.mxu0 0.0
  %813 = vmatprep.subr.mxu0 0.0
  %814 = vmatpush1.msra.mxu0 0.0
  %815 = vmatprep.subr.mxu0 0.0
  %816 = vmatpush1.msra.mxu0 0.0
  %817 = vmatprep.subr.mxu0 0.0
  %818 = vmatpush1.msra.mxu0 0.0
  %819 = vmatprep.subr.mxu0 0.0
  %820 = vmatpush1.msra.mxu0 0.0
  %821 = vmatprep.subr.mxu0 0.0
  %822 = vmatpush1.msra.mxu0 0.0
  %823 = vmatprep.subr.mxu0 0.0
  %824 = vmatpush1.msra.mxu0 0.0
  %825 = vmatprep.subr.mxu0 0.0
  %826 = vmatpush1.msra.mxu0 0.0
  %827 = vmatprep.subr.mxu0 0.0
  %828 = vmatpush1.msra.mxu0 0.0
  %829 = vmatprep.subr.mxu0 0.0
  %830 = vmatpush1.msra.mxu0 0.0
  %831 = vmatprep.subr.mxu0 0.0
  %832 = vmatpush1.msra.mxu0 0.0
  %833 = vmatprep.subr.mxu0 0.0
  %834 = vmatpush1.msra.mxu0 0.0
  %835 = vmatprep.subr.mxu0 0.0
  %836 = vmatpush1.msra.mxu0 0.0
  %837 = vmatprep.subr.mxu0 0.0
  %838 = vmatpush1.msra.mxu0 0.0
  %839 = vmatprep.subr.mxu0 0.0
  %840 = vmatpush1.msra.mxu0 0.0
  %841 = vmatprep.subr.mxu0 0.0
  %842 = vmatpush1.msra.mxu0 0.0
  %843 = vmatprep.subr.mxu0 0.0
  %844 = vmatpush1.msra.mxu0 0.0
  %845 = vmatprep.subr.mxu0 0.0
  %846 = vmatpush1.msra.mxu0 0.0
  %847 = vmatprep.subr.mxu0 0.0
  %848 = vmatpush1.msra.mxu0 0.0
  %849 = vmatprep.subr.mxu0 0.0
  %850 = vmatpush1.msra.mxu0 0.0
  %851 = vmatprep.subr.mxu0 0.0
  %852 = vmatpush1.msra.mxu0 0.0
  %853 = vmatprep.mubr.f32.mxu0 0.0
  %854 = vmatmul.mubr.f32.gmra.mrb[0].mxu0 %v637
  %v855 = vpop.f32.mrb[0].mxu0
  %v856 = vadd.f32 0.0, %v855
  %v857 = vpop.f32.mrb[0].mxu0
  %858 = vdwg.mxu0
  %v860 = vsel %vm476, %v856, 0
  %862 = vmatprep.subr.mxu0 0.0
  %863 = vmatpush1.msra.mxu0 %v468
  %864 = vmatprep.subr.mxu0 0.0
  %865 = vmatpush1.msra.mxu0 %v469
  %866 = vmatprep.subr.mxu0 0.0
  %867 = vmatpush1.msra.mxu0 %v470
  %868 = vmatprep.subr.mxu0 0.0
  %869 = vmatpush1.msra.mxu0 %v471
  %870 = vmatprep.subr.mxu0 0.0
  %871 = vmatpush1.msra.mxu0 0.0
  %872 = vmatprep.subr.mxu0 0.0
  %873 = vmatpush1.msra.mxu0 0.0
  %874 = vmatprep.subr.mxu0 0.0
  %875 = vmatpush1.msra.mxu0 0.0
  %876 = vmatprep.subr.mxu0 0.0
  %877 = vmatpush1.msra.mxu0 0.0
  %878 = vmatprep.subr.mxu0 0.0
  %879 = vmatpush1.msra.mxu0 0.0
  %880 = vmatprep.subr.mxu0 0.0
  %881 = vmatpush1.msra.mxu0 0.0
  %882 = vmatprep.subr.mxu0 0.0
  %883 = vmatpush1.msra.mxu0 0.0
  %884 = vmatprep.subr.mxu0 0.0
  %885 = vmatpush1.msra.mxu0 0.0
  %886 = vmatprep.subr.mxu0 0.0
  %887 = vmatpush1.msra.mxu0 0.0
  %888 = vmatprep.subr.mxu0 0.0
  %889 = vmatpush1.msra.mxu0 0.0
  %890 = vmatprep.subr.mxu0 0.0
  %891 = vmatpush1.msra.mxu0 0.0
  %892 = vmatprep.subr.mxu0 0.0
  %893 = vmatpush1.msra.mxu0 0.0
  %894 = vmatprep.subr.mxu0 0.0
  %895 = vmatpush1.msra.mxu0 0.0
  %896 = vmatprep.subr.mxu0 0.0
  %897 = vmatpush1.msra.mxu0 0.0
  %898 = vmatprep.subr.mxu0 0.0
  %899 = vmatpush1.msra.mxu0 0.0
  %900 = vmatprep.subr.mxu0 0.0
  %901 = vmatpush1.msra.mxu0 0.0
  %902 = vmatprep.subr.mxu0 0.0
  %903 = vmatpush1.msra.mxu0 0.0
  %904 = vmatprep.subr.mxu0 0.0
  %905 = vmatpush1.msra.mxu0 0.0
  %906 = vmatprep.subr.mxu0 0.0
  %907 = vmatpush1.msra.mxu0 0.0
  %908 = vmatprep.subr.mxu0 0.0
  %909 = vmatpush1.msra.mxu0 0.0
  %910 = vmatprep.subr.mxu0 0.0
  %911 = vmatpush1.msra.mxu0 0.0
  %912 = vmatprep.subr.mxu0 0.0
  %913 = vmatpush1.msra.mxu0 0.0
  %914 = vmatprep.subr.mxu0 0.0
  %915 = vmatpush1.msra.mxu0 0.0
  %916 = vmatprep.subr.mxu0 0.0
  %917 = vmatpush1.msra.mxu0 0.0
  %918 = vmatprep.subr.mxu0 0.0
  %919 = vmatpush1.msra.mxu0 0.0
  %920 = vmatprep.subr.mxu0 0.0
  %921 = vmatpush1.msra.mxu0 0.0
  %922 = vmatprep.subr.mxu0 0.0
  %923 = vmatpush1.msra.mxu0 0.0
  %924 = vmatprep.subr.mxu0 0.0
  %925 = vmatpush1.msra.mxu0 0.0
  %926 = vmatprep.mubr.f32.mxu0 0.0
  %927 = vmatmul.mubr.f32.gmra.mrb[0].mxu0 %v860
  %v928 = vpop.f32.mrb[0].mxu0
  %v929 = vadd.f32 0.0, %v928
  %v930 = vpop.f32.mrb[0].mxu0
  %931 = vdwg.mxu0
  %v932 = vmax.f32 %v929, 0.0
  %v934 = vrot.slane %v265, 1
  %vm937 = vcmask 1043456
  %v938 = vrot.slane %v458, 4
  %v939 = vrot.slane %v459, 4
  %v940 = vsel %vm937, %v938, %v939
  %v942 = vsel %vm110, %v934, %v940
  %v944 = vsel %vm476, %v942, 0
  %946 = vmatprep.subr.mxu0 0.0
  %947 = vmatpush1.msra.mxu0 %v460
  %948 = vmatprep.subr.mxu0 0.0
  %949 = vmatpush1.msra.mxu0 %v461
  %950 = vmatprep.subr.mxu0 0.0
  %951 = vmatpush1.msra.mxu0 %v462
  %952 = vmatprep.subr.mxu0 0.0
  %953 = vmatpush1.msra.mxu0 %v463
  %954 = vmatprep.subr.mxu0 0.0
  %955 = vmatpush1.msra.mxu0 0.0
  %956 = vmatprep.subr.mxu0 0.0
  %957 = vmatpush1.msra.mxu0 0.0
  %958 = vmatprep.subr.mxu0 0.0
  %959 = vmatpush1.msra.mxu0 0.0
  %960 = vmatprep.subr.mxu0 0.0
  %961 = vmatpush1.msra.mxu0 0.0
  %962 = vmatprep.subr.mxu0 0.0
  %963 = vmatpush1.msra.mxu0 0.0
  %964 = vmatprep.subr.mxu0 0.0
  %965 = vmatpush1.msra.mxu0 0.0
  %966 = vmatprep.subr.mxu0 0.0
  %967 = vmatpush1.msra.mxu0 0.0
  %968 = vmatprep.subr.mxu0 0.0
  %969 = vmatpush1.msra.mxu0 0.0
  %970 = vmatprep.subr.mxu0 0.0
  %971 = vmatpush1.msra.mxu0 0.0
  %972 = vmatprep.subr.mxu0 0.0
  %973 = vmatpush1.msra.mxu0 0.0
  %974 = vmatprep.subr.mxu0 0.0
  %975 = vmatpush1.msra.mxu0 0.0
  %976 = vmatprep.subr.mxu0 0.0
  %977 = vmatpush1.msra.mxu0 0.0
  %978 = vmatprep.subr.mxu0 0.0
  %979 = vmatpush1.msra.mxu0 0.0
  %980 = vmatprep.subr.mxu0 0.0
  %981 = vmatpush1.msra.mxu0 0.0
  %982 = vmatprep.subr.mxu0 0.0
  %983 = vmatpush1.msra.mxu0 0.0
  %984 = vmatprep.subr.mxu0 0.0
  %985 = vmatpush1.msra.mxu0 0.0
  %986 = vmatprep.subr.mxu0 0.0
  %987 = vmatpush1.msra.mxu0 0.0
  %988 = vmatprep.subr.mxu0 0.0
  %989 = vmatpush1.msra.mxu0 0.0
  %990 = vmatprep.subr.mxu0 0.0
  %991 = vmatpush1.msra.mxu0 0.0
  %992 = vmatprep.subr.mxu0 0.0
  %993 = vmatpush1.msra.mxu0 0.0
  %994 = vmatprep.subr.mxu0 0.0
  %995 = vmatpush1.msra.mxu0 0.0
  %996 = vmatprep.subr.mxu0 0.0
  %997 = vmatpush1.msra.mxu0 0.0
  %998 = vmatprep.subr.mxu0 0.0
  %999 = vmatpush1.msra.mxu0 0.0
  %1000 = vmatprep.subr.mxu0 0.0
  %1001 = vmatpush1.msra.mxu0 0.0
  %1002 = vmatprep.subr.mxu0 0.0
  %1003 = vmatpush1.msra.mxu0 0.0
  %1004 = vmatprep.subr.mxu0 0.0
  %1005 = vmatpush1.msra.mxu0 0.0
  %1006 = vmatprep.subr.mxu0 0.0
  %1007 = vmatpush1.msra.mxu0 0.0
  %1008 = vmatprep.subr.mxu0 0.0
  %1009 = vmatpush1.msra.mxu0 0.0
  %1010 = vmatprep.mubr.f32.mxu0 0.0
  %1011 = vmatmul.mubr.f32.gmra.mrb[0].mxu0 %v944
  %v1012 = vpop.f32.mrb[0].mxu0
  %v1013 = vadd.f32 0.0, %v1012
  %v1014 = vpop.f32.mrb[0].mxu0
  %1015 = vdwg.mxu0
  %v1017 = vsel %vm476, %v1013, 0
  %1019 = vmatprep.subr.mxu0 0.0
  %1020 = vmatpush1.xpose.msra.mxu0 %v944
  %1021 = vmatprep.subr.mxu0 0.0
  %1022 = vmatpush1.xpose.msra.mxu0 0.0
  %1023 = vmatprep.subr.mxu0 0.0
  %1024 = vmatpush1.xpose.msra.mxu0 0.0
  %1025 = vmatprep.subr.mxu0 0.0
  %1026 = vmatpush1.xpose.msra.mxu0 0.0
  %1027 = vmatprep.subr.mxu0 0.0
  %1028 = vmatpush1.xpose.msra.mxu0 0.0
  %1029 = vmatprep.subr.mxu0 0.0
  %1030 = vmatpush1.xpose.msra.mxu0 0.0
  %1031 = vmatprep.subr.mxu0 0.0
  %1032 = vmatpush1.xpose.msra.mxu0 0.0
  %1033 = vmatprep.subr.mxu0 0.0
  %1034 = vmatpush1.xpose.msra.mxu0 0.0
  %1035 = vmatprep.subr.mxu0 0.0
  %1036 = vmatpush1.xpose.msra.mxu0 0.0
  %1037 = vmatprep.subr.mxu0 0.0
  %1038 = vmatpush1.xpose.msra.mxu0 0.0
  %1039 = vmatprep.subr.mxu0 0.0
  %1040 = vmatpush1.xpose.msra.mxu0 0.0
  %1041 = vmatprep.subr.mxu0 0.0
  %1042 = vmatpush1.xpose.msra.mxu0 0.0
  %1043 = vmatprep.subr.mxu0 0.0
  %1044 = vmatpush1.xpose.msra.mxu0 0.0
  %1045 = vmatprep.subr.mxu0 0.0
  %1046 = vmatpush1.xpose.msra.mxu0 0.0
  %1047 = vmatprep.subr.mxu0 0.0
  %1048 = vmatpush1.xpose.msra.mxu0 0.0
  %1049 = vmatprep.subr.mxu0 0.0
  %1050 = vmatpush1.xpose.msra.mxu0 0.0
  %1051 = vmatprep.subr.mxu0 0.0
  %1052 = vmatpush1.xpose.msra.mxu0 0.0
  %1053 = vmatprep.subr.mxu0 0.0
  %1054 = vmatpush1.xpose.msra.mxu0 0.0
  %1055 = vmatprep.subr.mxu0 0.0
  %1056 = vmatpush1.xpose.msra.mxu0 0.0
  %1057 = vmatprep.subr.mxu0 0.0
  %1058 = vmatpush1.xpose.msra.mxu0 0.0
  %1059 = vmatprep.subr.mxu0 0.0
  %1060 = vmatpush1.xpose.msra.mxu0 0.0
  %1061 = vmatprep.subr.mxu0 0.0
  %1062 = vmatpush1.xpose.msra.mxu0 0.0
  %1063 = vmatprep.subr.mxu0 0.0
  %1064 = vmatpush1.xpose.msra.mxu0 0.0
  %1065 = vmatprep.subr.mxu0 0.0
  %1066 = vmatpush1.xpose.msra.mxu0 0.0
  %1067 = vmatprep.subr.mxu0 0.0
  %1068 = vmatpush1.xpose.msra.mxu0 0.0
  %1069 = vmatprep.subr.mxu0 0.0
  %1070 = vmatpush1.xpose.msra.mxu0 0.0
  %1071 = vmatprep.subr.mxu0 0.0
  %1072 = vmatpush1.xpose.msra.mxu0 0.0
  %1073 = vmatprep.subr.mxu0 0.0
  %1074 = vmatpush1.xpose.msra.mxu0 0.0
  %1075 = vmatprep.subr.mxu0 0.0
  %1076 = vmatpush1.xpose.msra.mxu0 0.0
  %1077 = vmatprep.subr.mxu0 0.0
  %1078 = vmatpush1.xpose.msra.mxu0 0.0
  %1079 = vmatprep.subr.mxu0 0.0
  %1080 = vmatpush1.xpose.msra.mxu0 0.0
  %1081 = vmatprep.subr.mxu0 0.0
  %1082 = vmatpush1.xpose.msra.mxu0 0.0
  %1083 = vmatprep.mubr.f32.mxu0 0.0
  %1084 = vmatmul.mubr.f32.gmra.mrb[0].mxu0 %v1017
  %v1085 = vpop.f32.mrb[0].mxu0
  %v1086 = vadd.f32 0.0, %v1085
  %v1087 = vpop.f32.mrb[0].mxu0
  %1088 = vdwg.mxu0
  %v1089 = vsel %vm623, %v1086, -inf
  %1090 = vmax.xlane.f32.xlu0 %v1089
  %v1091 = vpop.xlane.xlu0 %1090
  %v1092 = vsub.f32 %v1086, %v1091
  %v1093 = vmul.f32 %v1092, 1.442695
  %v1094 = vpow.pop %v1093
  %v1095 = vsel %vm623, %v1094, 0.0
  %1096 = vadd.xlane.f32.xlu0 %v1095
  %v1097 = vpop.xlane.xlu0 %1096
  %v1098 = vrcp.pop %v1097
  %v1099 = vmul.f32 %v1094, %v1098
  %v1101 = vsel %vm635, %v1099, 0
  %v1103 = vsel %vm639, %v942, 0
  %1105 = vmatprep.subr.mxu0 0.0
  %1106 = vmatpush1.msra.mxu0 %v1103
  %1107 = vmatprep.subr.mxu0 0.0
  %1108 = vmatpush1.msra.mxu0 0.0
  %1109 = vmatprep.subr.mxu0 0.0
  %1110 = vmatpush1.msra.mxu0 0.0
  %1111 = vmatprep.subr.mxu0 0.0
  %1112 = vmatpush1.msra.mxu0 0.0
  %1113 = vmatprep.subr.mxu0 0.0
  %1114 = vmatpush1.msra.mxu0 0.0
  %1115 = vmatprep.subr.mxu0 0.0
  %1116 = vmatpush1.msra.mxu0 0.0
  %1117 = vmatprep.subr.mxu0 0.0
  %1118 = vmatpush1.msra.mxu0 0.0
  %1119 = vmatprep.subr.mxu0 0.0
  %1120 = vmatpush1.msra.mxu0 0.0
  %1121 = vmatprep.subr.mxu0 0.0
  %1122 = vmatpush1.msra.mxu0 0.0
  %1123 = vmatprep.subr.mxu0 0.0
  %1124 = vmatpush1.msra.mxu0 0.0
  %1125 = vmatprep.subr.mxu0 0.0
  %1126 = vmatpush1.msra.mxu0 0.0
  %1127 = vmatprep.subr.mxu0 0.0
  %1128 = vmatpush1.msra.mxu0 0.0
  %1129 = vmatprep.subr.mxu0 0.0
  %1130 = vmatpush1.msra.mxu0 0.0
  %1131 = vmatprep.subr.mxu0 0.0
  %1132 = vmatpush1.msra.mxu0 0.0
  %1133 = vmatprep.subr.mxu0 0.0
  %1134 = vmatpush1.msra.mxu0 0.0
  %1135 = vmatprep.subr.mxu0 0.0
  %1136 = vmatpush1.msra.mxu0 0.0
  %1137 = vmatprep.subr.mxu0 0.0
  %1138 = vmatpush1.msra.mxu0 0.0
  %1139 = vmatprep.subr.mxu0 0.0
  %1140 = vmatpush1.msra.mxu0 0.0
  %1141 = vmatprep.subr.mxu0 0.0
  %1142 = vmatpush1.msra.mxu0 0.0
  %1143 = vmatprep.subr.mxu0 0.0
  %1144 = vmatpush1.msra.mxu0 0.0
  %1145 = vmatprep.subr.mxu0 0.0
  %1146 = vmatpush1.msra.mxu0 0.0
  %1147 = vmatprep.subr.mxu0 0.0
  %1148 = vmatpush1.msra.mxu0 0.0
  %1149 = vmatprep.subr.mxu0 0.0
  %1150 = vmatpush1.msra.mxu0 0.0
  %1151 = vmatprep.subr.mxu0 0.0
  %1152 = vmatpush1.msra.mxu0 0.0
  %1153 = vmatprep.subr.mxu0 0.0
  %1154 = vmatpush1.msra.mxu0 0.0
  %1155 = vmatprep.subr.mxu0 0.0
  %1156 = vmatpush1.msra.mxu0 0.0
  %1157 = vmatprep.subr.mxu0 0.0
  %1158 = vmatpush1.msra.mxu0 0.0
  %1159 = vmatprep.subr.mxu0 0.0
  %1160 = vmatpush1.msra.mxu0 0.0
  %1161 = vmatprep.subr.mxu0 0.0
  %1162 = vmatpush1.msra.mxu0 0.0
  %1163 = vmatprep.subr.mxu0 0.0
  %1164 = vmatpush1.msra.mxu0 0.0
  %1165 = vmatprep.subr.mxu0 0.0
  %1166 = vmatpush1.msra.mxu0 0.0
  %1167 = vmatprep.subr.mxu0 0.0
  %1168 = vmatpush1.msra.mxu0 0.0
  %1169 = vmatprep.mubr.f32.mxu0 0.0
  %1170 = vmatmul.mubr.f32.gmra.mrb[0].mxu0 %v1101
  %v1171 = vpop.f32.mrb[0].mxu0
  %v1172 = vadd.f32 0.0, %v1171
  %v1173 = vpop.f32.mrb[0].mxu0
  %1174 = vdwg.mxu0
  %v1176 = vsel %vm476, %v1172, 0
  %1178 = vmatprep.subr.mxu0 0.0
  %1179 = vmatpush1.msra.mxu0 %v464
  %1180 = vmatprep.subr.mxu0 0.0
  %1181 = vmatpush1.msra.mxu0 %v465
  %1182 = vmatprep.subr.mxu0 0.0
  %1183 = vmatpush1.msra.mxu0 %v466
  %1184 = vmatprep.subr.mxu0 0.0
  %1185 = vmatpush1.msra.mxu0 %v467
  %1186 = vmatprep.subr.mxu0 0.0
  %1187 = vmatpush1.msra.mxu0 0.0
  %1188 = vmatprep.subr.mxu0 0.0
  %1189 = vmatpush1.msra.mxu0 0.0
  %1190 = vmatprep.subr.mxu0 0.0
  %1191 = vmatpush1.msra.mxu0 0.0
  %1192 = vmatprep.subr.mxu0 0.0
  %1193 = vmatpush1.msra.mxu0 0.0
  %1194 = vmatprep.subr.mxu0 0.0
  %1195 = vmatpush1.msra.mxu0 0.0
  %1196 = vmatprep.subr.mxu0 0.0
  %1197 = vmatpush1.msra.mxu0 0.0
  %1198 = vmatprep.subr.mxu0 0.0
  %1199 = vmatpush1.msra.mxu0 0.0
  %1200 = vmatprep.subr.mxu0 0.0
  %1201 = vmatpush1.msra.mxu0 0.0
  %1202 = vmatprep.subr.mxu0 0.0
  %1203 = vmatpush1.msra.mxu0 0.0
  %1204 = vmatprep.subr.mxu0 0.0
  %1205 = vmatpush1.msra.mxu0 0.0
  %1206 = vmatprep.subr.mxu0 0.0
  %1207 = vmatpush1.msra.mxu0 0.0
  %1208 = vmatprep.subr.mxu0 0.0
  %1209 = vmatpush1.msra.mxu0 0.0
  %1210 = vmatprep.subr.mxu0 0.0
  %1211 = vmatpush1.msra.mxu0 0.0
  %1212 = vmatprep.subr.mxu0 0.0
  %1213 = vmatpush1.msra.mxu0 0.0
  %1214 = vmatprep.subr.mxu0 0.0
  %1215 = vmatpush1.msra.mxu0 0.0
  %1216 = vmatprep.subr.mxu0 0.0
  %1217 = vmatpush1.msra.mxu0 0.0
  %1218 = vmatprep.subr.mxu0 0.0
  %1219 = vmatpush1.msra.mxu0 0.0
  %1220 = vmatprep.subr.mxu0 0.0
  %1221 = vmatpush1.msra.mxu0 0.0
  %1222 = vmatprep.subr.mxu0 0.0
  %1223 = vmatpush1.msra.mxu0 0.0
  %1224 = vmatprep.subr.mxu0 0.0
  %1225 = vmatpush1.msra.mxu0 0.0
  %1226 = vmatprep.subr.mxu0 0.0
  %1227 = vmatpush1.msra.mxu0 0.0
  %1228 = vmatprep.subr.mxu0 0.0
  %1229 = vmatpush1.msra.mxu0 0.0
  %1230 = vmatprep.subr.mxu0 0.0
  %1231 = vmatpush1.msra.mxu0 0.0
  %1232 = vmatprep.subr.mxu0 0.0
  %1233 = vmatpush1.msra.mxu0 0.0
  %1234 = vmatprep.subr.mxu0 0.0
  %1235 = vmatpush1.msra.mxu0 0.0
  %1236 = vmatprep.subr.mxu0 0.0
  %1237 = vmatpush1.msra.mxu0 0.0
  %1238 = vmatprep.subr.mxu0 0.0
  %1239 = vmatpush1.msra.mxu0 0.0
  %1240 = vmatprep.subr.mxu0 0.0
  %1241 = vmatpush1.msra.mxu0 0.0
  %1242 = vmatprep.mubr.f32.mxu0 0.0
  %1243 = vmatmul.mubr.f32.gmra.mrb[0].mxu0 %v1176
  %v1244 = vpop.f32.mrb[0].mxu0
  %v1245 = vadd.f32 0.0, %v1244
  %v1246 = vpop.f32.mrb[0].mxu0
  %1247 = vdwg.mxu0
  %v1248 = vmax.f32 %v1245, 0.0
  %v1250 = vsel %vm639, %v1248, 0
  %1252 = vmatprep.subr.mxu0 0.0
  %1253 = vmatpush1.msra.mxu0 %v1250
  %1254 = vmatprep.subr.mxu0 0.0
  %1255 = vmatpush1.msra.mxu0 0.0
  %1256 = vmatprep.subr.mxu0 0.0
  %1257 = vmatpush1.msra.mxu0 0.0
  %1258 = vmatprep.subr.mxu0 0.0
  %1259 = vmatpush1.msra.mxu0 0.0
  %1260 = vmatprep.subr.mxu0 0.0
  %1261 = vmatpush1.msra.mxu0 0.0
  %1262 = vmatprep.subr.mxu0 0.0
  %1263 = vmatpush1.msra.mxu0 0.0
  %1264 = vmatprep.subr.mxu0 0.0
  %1265 = vmatpush1.msra.mxu0 0.0
  %1266 = vmatprep.subr.mxu0 0.0
  %1267 = vmatpush1.msra.mxu0 0.0
  %1268 = vmatprep.subr.mxu0 0.0
  %1269 = vmatpush1.msra.mxu0 0.0
  %1270 = vmatprep.subr.mxu0 0.0
  %1271 = vmatpush1.msra.mxu0 0.0
  %1272 = vmatprep.subr.mxu0 0.0
  %1273 = vmatpush1.msra.mxu0 0.0
  %1274 = vmatprep.subr.mxu0 0.0
  %1275 = vmatpush1.msra.mxu0 0.0
  %1276 = vmatprep.subr.mxu0 0.0
  %1277 = vmatpush1.msra.mxu0 0.0
  %1278 = vmatprep.subr.mxu0 0.0
  %1279 = vmatpush1.msra.mxu0 0.0
  %1280 = vmatprep.subr.mxu0 0.0
  %1281 = vmatpush1.msra.mxu0 0.0
  %1282 = vmatprep.subr.mxu0 0.0
  %1283 = vmatpush1.msra.mxu0 0.0
  %1284 = vmatprep.subr.mxu0 0.0
  %1285 = vmatpush1.msra.mxu0 0.0
  %1286 = vmatprep.subr.mxu0 0.0
  %1287 = vmatpush1.msra.mxu0 0.0
  %1288 = vmatprep.subr.mxu0 0.0
  %1289 = vmatpush1.msra.mxu0 0.0
  %1290 = vmatprep.subr.mxu0 0.0
  %1291 = vmatpush1.msra.mxu0 0.0
  %1292 = vmatprep.subr.mxu0 0.0
  %1293 = vmatpush1.msra.mxu0 0.0
  %1294 = vmatprep.subr.mxu0 0.0
  %1295 = vmatpush1.msra.mxu0 0.0
  %1296 = vmatprep.subr.mxu0 0.0
  %1297 = vmatpush1.msra.mxu0 0.0
  %1298 = vmatprep.subr.mxu0 0.0
  %1299 = vmatpush1.msra.mxu0 0.0
  %1300 = vmatprep.subr.mxu0 0.0
  %1301 = vmatpush1.msra.mxu0 0.0
  %1302 = vmatprep.subr.mxu0 0.0
  %1303 = vmatpush1.msra.mxu0 0.0
  %1304 = vmatprep.subr.mxu0 0.0
  %1305 = vmatpush1.msra.mxu0 0.0
  %1306 = vmatprep.subr.mxu0 0.0
  %1307 = vmatpush1.msra.mxu0 0.0
  %1308 = vmatprep.subr.mxu0 0.0
  %1309 = vmatpush1.msra.mxu0 0.0
  %1310 = vmatprep.subr.mxu0 0.0
  %1311 = vmatpush1.msra.mxu0 0.0
  %1312 = vmatprep.subr.mxu0 0.0
  %1313 = vmatpush1.msra.mxu0 0.0
  %1314 = vmatprep.subr.mxu0 0.0
  %1315 = vmatpush1.msra.mxu0 0.0
  %1316 = vmatprep.mubr.f32.mxu0 0.0
  %1317 = vmatmul.mubr.f32.gmra.mrb[0].mxu0 %v1101
  %v1318 = vpop.f32.mrb[0].mxu0
  %v1319 = vadd.f32 0.0, %v1318
  %v1320 = vpop.f32.mrb[0].mxu0
  %1321 = vdwg.mxu0
  %v1323 = vsel %vm476, %v1319, 0
  %1325 = vmatprep.subr.mxu0 0.0
  %1326 = vmatpush1.msra.mxu0 %v468
  %1327 = vmatprep.subr.mxu0 0.0
  %1328 = vmatpush1.msra.mxu0 %v469
  %1329 = vmatprep.subr.mxu0 0.0
  %1330 = vmatpush1.msra.mxu0 %v470
  %1331 = vmatprep.subr.mxu0 0.0
  %1332 = vmatpush1.msra.mxu0 %v471
  %1333 = vmatprep.subr.mxu0 0.0
  %1334 = vmatpush1.msra.mxu0 0.0
  %1335 = vmatprep.subr.mxu0 0.0
  %1336 = vmatpush1.msra.mxu0 0.0
  %1337 = vmatprep.subr.mxu0 0.0
  %1338 = vmatpush1.msra.mxu0 0.0
  %1339 = vmatprep.subr.mxu0 0.0
  %1340 = vmatpush1.msra.mxu0 0.0
  %1341 = vmatprep.subr.mxu0 0.0
  %1342 = vmatpush1.msra.mxu0 0.0
  %1343 = vmatprep.subr.mxu0 0.0
  %1344 = vmatpush1.msra.mxu0 0.0
  %1345 = vmatprep.subr.mxu0 0.0
  %1346 = vmatpush1.msra.mxu0 0.0
  %1347 = vmatprep.subr.mxu0 0.0
  %1348 = vmatpush1.msra.mxu0 0.0
  %1349 = vmatprep.subr.mxu0 0.0
  %1350 = vmatpush1.msra.mxu0 0.0
  %1351 = vmatprep.subr.mxu0 0.0
  %1352 = vmatpush1.msra.mxu0 0.0
  %1353 = vmatprep.subr.mxu0 0.0
  %1354 = vmatpush1.msra.mxu0 0.0
  %1355 = vmatprep.subr.mxu0 0.0
  %1356 = vmatpush1.msra.mxu0 0.0
  %1357 = vmatprep.subr.mxu0 0.0
  %1358 = vmatpush1.msra.mxu0 0.0
  %1359 = vmatprep.subr.mxu0 0.0
  %1360 = vmatpush1.msra.mxu0 0.0
  %1361 = vmatprep.subr.mxu0 0.0
  %1362 = vmatpush1.msra.mxu0 0.0
  %1363 = vmatprep.subr.mxu0 0.0
  %1364 = vmatpush1.msra.mxu0 0.0
  %1365 = vmatprep.subr.mxu0 0.0
  %1366 = vmatpush1.msra.mxu0 0.0
  %1367 = vmatprep.subr.mxu0 0.0
  %1368 = vmatpush1.msra.mxu0 0.0
  %1369 = vmatprep.subr.mxu0 0.0
  %1370 = vmatpush1.msra.mxu0 0.0
  %1371 = vmatprep.subr.mxu0 0.0
  %1372 = vmatpush1.msra.mxu0 0.0
  %1373 = vmatprep.subr.mxu0 0.0
  %1374 = vmatpush1.msra.mxu0 0.0
  %1375 = vmatprep.subr.mxu0 0.0
  %1376 = vmatpush1.msra.mxu0 0.0
  %1377 = vmatprep.subr.mxu0 0.0
  %1378 = vmatpush1.msra.mxu0 0.0
  %1379 = vmatprep.subr.mxu0 0.0
  %1380 = vmatpush1.msra.mxu0 0.0
  %1381 = vmatprep.subr.mxu0 0.0
  %1382 = vmatpush1.msra.mxu0 0.0
  %1383 = vmatprep.subr.mxu0 0.0
  %1384 = vmatpush1.msra.mxu0 0.0
  %1385 = vmatprep.subr.mxu0 0.0
  %1386 = vmatpush1.msra.mxu0 0.0
  %1387 = vmatprep.subr.mxu0 0.0
  %1388 = vmatpush1.msra.mxu0 0.0
  %1389 = vmatprep.mubr.f32.mxu0 0.0
  %1390 = vmatmul.mubr.f32.gmra.mrb[0].mxu0 %v1323
  %v1391 = vpop.f32.mrb[0].mxu0
  %v1392 = vadd.f32 0.0, %v1391
  %v1393 = vpop.f32.mrb[0].mxu0
  %1394 = vdwg.mxu0
  %v1395 = vmax.f32 %v1392, 0.0
  %v1397 = vrot.slane %v1395, 7
  %v1399 = vsel %vm110, %v932, %v1397
  %v1400 = vld [vmem:[%s14] sm:$0xff]
  %v1401 = vld [vmem:[%s14 + $0x8] sm:$0xff]
  %v1402 = vld [vmem:[%s14 + $0x10] sm:$0xff]
  %v1403 = vld [vmem:[%s14 + $0x18] sm:$0xff]
  %v1404 = vld [vmem:[%s14 + $0x20] sm:$0xff]
  %v1405 = vld [vmem:[%s14 + $0x28] sm:$0xff]
  %v1406 = vld [vmem:[%s14 + $0x30] sm:$0xff]
  %v1407 = vld [vmem:[%s14 + $0x38] sm:$0xff]
  %v1408 = vld [vmem:[%s14 + $0x40] sm:$0xff]
  %v1409 = vld [vmem:[%s14 + $0x48] sm:$0xff]
  %v1410 = vld [vmem:[%s14 + $0x50] sm:$0xff]
  %v1411 = vld [vmem:[%s14 + $0x58] sm:$0xff]
  %v1412 = vld [vmem:[%s14 + $0x60] sm:$0xff]
  %v1413 = vld [vmem:[%s14 + $0x68] sm:$0xff]
  %v1414 = vld [vmem:[%s14 + $0x70] sm:$0xff]
  %v1415 = vld [vmem:[%s14 + $0x78] sm:$0xff]
  %v1416 = vld [vmem:[%s15] sm:$0xff]
  %v1418 = vcombine.high %v1416, %v1416
  %v1420 = vunpack.c.l.s4 1983009808
  %v1421 = vunpack.c.0.s8 %v1420
  %v1422 = vlaneseq
  %v1423 = vshrl.u32 %v1422, 7
  %v1424 = vsub.s32 %v1421, %v1423
  %v1425 = vrot.slane %v1416, %v1424
  %v1427 = vunpack.c.l.s4 1983009808
  %v1428 = vunpack.c.0.s8 %v1427
  %v1429 = vlaneseq
  %v1430 = vshrl.u32 %v1429, 7
  %v1431 = vsub.s32 %v1428, %v1430
  %v1432 = vrot.slane %v1418, %v1431
  %v1433 = vcombine.high %v1425, %v1425
  %v1434 = vcombine.high %v1432, %v1432
  %vm1435 = vcmask 15360
  %v1437 = vsel %vm1435, %v87, 0
  %vm1439 = vcmask 1041408
  %v1440 = vsel %vm1439, %v1425, 0
  %v1442 = vsel %vm1439, %v1433, 0
  %v1444 = vsel %vm1439, %v1432, 0
  %v1446 = vsel %vm1439, %v1434, 0
  %1448 = vmatprep.subr.mxu0 %v1442
  %1449 = vmatpush1.msra.mxu0 %v1440
  %1450 = vmatprep.subr.mxu0 0.0
  %1451 = vmatpush1.msra.mxu0 0.0
  %1452 = vmatprep.subr.mxu0 0.0
  %1453 = vmatpush1.msra.mxu0 0.0
  %1454 = vmatprep.subr.mxu0 0.0
  %1455 = vmatpush1.msra.mxu0 0.0
  %1456 = vmatprep.subr.mxu0 0.0
  %1457 = vmatpush1.msra.mxu0 0.0
  %1458 = vmatprep.subr.mxu0 0.0
  %1459 = vmatpush1.msra.mxu0 0.0
  %1460 = vmatprep.subr.mxu0 0.0
  %1461 = vmatpush1.msra.mxu0 0.0
  %1462 = vmatprep.subr.mxu0 0.0
  %1463 = vmatpush1.msra.mxu0 0.0
  %1464 = vmatprep.subr.mxu0 0.0
  %1465 = vmatpush1.msra.mxu0 0.0
  %1466 = vmatprep.subr.mxu0 0.0
  %1467 = vmatpush1.msra.mxu0 0.0
  %1468 = vmatprep.subr.mxu0 0.0
  %1469 = vmatpush1.msra.mxu0 0.0
  %1470 = vmatprep.subr.mxu0 0.0
  %1471 = vmatpush1.msra.mxu0 0.0
  %1472 = vmatprep.subr.mxu0 0.0
  %1473 = vmatpush1.msra.mxu0 0.0
  %1474 = vmatprep.subr.mxu0 0.0
  %1475 = vmatpush1.msra.mxu0 0.0
  %1476 = vmatprep.subr.mxu0 0.0
  %1477 = vmatpush1.msra.mxu0 0.0
  %1478 = vmatprep.subr.mxu0 0.0
  %1479 = vmatpush1.msra.mxu0 0.0
  %1480 = vmatprep.subr.mxu0 0.0
  %1481 = vmatpush1.msra.mxu0 0.0
  %1482 = vmatprep.subr.mxu0 0.0
  %1483 = vmatpush1.msra.mxu0 0.0
  %1484 = vmatprep.subr.mxu0 0.0
  %1485 = vmatpush1.msra.mxu0 0.0
  %1486 = vmatprep.subr.mxu0 0.0
  %1487 = vmatpush1.msra.mxu0 0.0
  %1488 = vmatprep.subr.mxu0 0.0
  %1489 = vmatpush1.msra.mxu0 0.0
  %1490 = vmatprep.subr.mxu0 0.0
  %1491 = vmatpush1.msra.mxu0 0.0
  %1492 = vmatprep.subr.mxu0 0.0
  %1493 = vmatpush1.msra.mxu0 0.0
  %1494 = vmatprep.subr.mxu0 0.0
  %1495 = vmatpush1.msra.mxu0 0.0
  %1496 = vmatprep.subr.mxu0 0.0
  %1497 = vmatpush1.msra.mxu0 0.0
  %1498 = vmatprep.subr.mxu0 0.0
  %1499 = vmatpush1.msra.mxu0 0.0
  %1500 = vmatprep.subr.mxu0 0.0
  %1501 = vmatpush1.msra.mxu0 0.0
  %1502 = vmatprep.subr.mxu0 0.0
  %1503 = vmatpush1.msra.mxu0 0.0
  %1504 = vmatprep.subr.mxu0 0.0
  %1505 = vmatpush1.msra.mxu0 0.0
  %1506 = vmatprep.subr.mxu0 0.0
  %1507 = vmatpush1.msra.mxu0 0.0
  %1508 = vmatprep.subr.mxu0 0.0
  %1509 = vmatpush1.msra.mxu0 0.0
  %1510 = vmatprep.subr.mxu0 0.0
  %1511 = vmatpush1.msra.mxu0 0.0
  %1512 = vmatprep.mubr.f32.mxu0 0.0
  %1513 = vmatmul.mubr.f32.gmra.mrb[0].mxu0 %v1437
  %v1514 = vpop.f32.mrb[0].mxu0
  %v1515 = vadd.f32 0.0, %v1514
  %v1516 = vpop.f32.mrb[0].mxu0
  %v1517 = vadd.f32 0.0, %v1516
  %1518 = vdwg.mxu0
  %1519 = vmatprep.subr.mxu0 %v1446
  %1520 = vmatpush1.msra.mxu0 %v1444
  %1521 = vmatprep.subr.mxu0 0.0
  %1522 = vmatpush1.msra.mxu0 0.0
  %1523 = vmatprep.subr.mxu0 0.0
  %1524 = vmatpush1.msra.mxu0 0.0
  %1525 = vmatprep.subr.mxu0 0.0
  %1526 = vmatpush1.msra.mxu0 0.0
  %1527 = vmatprep.subr.mxu0 0.0
  %1528 = vmatpush1.msra.mxu0 0.0
  %1529 = vmatprep.subr.mxu0 0.0
  %1530 = vmatpush1.msra.mxu0 0.0
  %1531 = vmatprep.subr.mxu0 0.0
  %1532 = vmatpush1.msra.mxu0 0.0
  %1533 = vmatprep.subr.mxu0 0.0
  %1534 = vmatpush1.msra.mxu0 0.0
  %1535 = vmatprep.subr.mxu0 0.0
  %1536 = vmatpush1.msra.mxu0 0.0
  %1537 = vmatprep.subr.mxu0 0.0
  %1538 = vmatpush1.msra.mxu0 0.0
  %1539 = vmatprep.subr.mxu0 0.0
  %1540 = vmatpush1.msra.mxu0 0.0
  %1541 = vmatprep.subr.mxu0 0.0
  %1542 = vmatpush1.msra.mxu0 0.0
  %1543 = vmatprep.subr.mxu0 0.0
  %1544 = vmatpush1.msra.mxu0 0.0
  %1545 = vmatprep.subr.mxu0 0.0
  %1546 = vmatpush1.msra.mxu0 0.0
  %1547 = vmatprep.subr.mxu0 0.0
  %1548 = vmatpush1.msra.mxu0 0.0
  %1549 = vmatprep.subr.mxu0 0.0
  %1550 = vmatpush1.msra.mxu0 0.0
  %1551 = vmatprep.subr.mxu0 0.0
  %1552 = vmatpush1.msra.mxu0 0.0
  %1553 = vmatprep.subr.mxu0 0.0
  %1554 = vmatpush1.msra.mxu0 0.0
  %1555 = vmatprep.subr.mxu0 0.0
  %1556 = vmatpush1.msra.mxu0 0.0
  %1557 = vmatprep.subr.mxu0 0.0
  %1558 = vmatpush1.msra.mxu0 0.0
  %1559 = vmatprep.subr.mxu0 0.0
  %1560 = vmatpush1.msra.mxu0 0.0
  %1561 = vmatprep.subr.mxu0 0.0
  %1562 = vmatpush1.msra.mxu0 0.0
  %1563 = vmatprep.subr.mxu0 0.0
  %1564 = vmatpush1.msra.mxu0 0.0
  %1565 = vmatprep.subr.mxu0 0.0
  %1566 = vmatpush1.msra.mxu0 0.0
  %1567 = vmatprep.subr.mxu0 0.0
  %1568 = vmatpush1.msra.mxu0 0.0
  %1569 = vmatprep.subr.mxu0 0.0
  %1570 = vmatpush1.msra.mxu0 0.0
  %1571 = vmatprep.subr.mxu0 0.0
  %1572 = vmatpush1.msra.mxu0 0.0
  %1573 = vmatprep.subr.mxu0 0.0
  %1574 = vmatpush1.msra.mxu0 0.0
  %1575 = vmatprep.subr.mxu0 0.0
  %1576 = vmatpush1.msra.mxu0 0.0
  %1577 = vmatprep.subr.mxu0 0.0
  %1578 = vmatpush1.msra.mxu0 0.0
  %1579 = vmatprep.subr.mxu0 0.0
  %1580 = vmatpush1.msra.mxu0 0.0
  %1581 = vmatprep.subr.mxu0 0.0
  %1582 = vmatpush1.msra.mxu0 0.0
  %1583 = vmatprep.mubr.f32.mxu0 0.0
  %1584 = vmatmul.mubr.f32.gmra.mrb[0].mxu0 %v1437
  %v1585 = vpop.f32.mrb[0].mxu0
  %v1586 = vadd.f32 0.0, %v1585
  %v1587 = vpop.f32.mrb[0].mxu0
  %v1588 = vadd.f32 0.0, %v1587
  %1589 = vdwg.mxu0
  %v1591 = vsel %vm476, %v1399, 0
  %1593 = vmatprep.subr.mxu0 %v1401
  %1594 = vmatpush1.msra.mxu0 %v1400
  %1595 = vmatprep.subr.mxu0 %v1405
  %1596 = vmatpush1.msra.mxu0 %v1404
  %1597 = vmatprep.subr.mxu0 %v1409
  %1598 = vmatpush1.msra.mxu0 %v1408
  %1599 = vmatprep.subr.mxu0 %v1413
  %1600 = vmatpush1.msra.mxu0 %v1412
  %1601 = vmatprep.subr.mxu0 0.0
  %1602 = vmatpush1.msra.mxu0 0.0
  %1603 = vmatprep.subr.mxu0 0.0
  %1604 = vmatpush1.msra.mxu0 0.0
  %1605 = vmatprep.subr.mxu0 0.0
  %1606 = vmatpush1.msra.mxu0 0.0
  %1607 = vmatprep.subr.mxu0 0.0
  %1608 = vmatpush1.msra.mxu0 0.0
  %1609 = vmatprep.subr.mxu0 0.0
  %1610 = vmatpush1.msra.mxu0 0.0
  %1611 = vmatprep.subr.mxu0 0.0
  %1612 = vmatpush1.msra.mxu0 0.0
  %1613 = vmatprep.subr.mxu0 0.0
  %1614 = vmatpush1.msra.mxu0 0.0
  %1615 = vmatprep.subr.mxu0 0.0
  %1616 = vmatpush1.msra.mxu0 0.0
  %1617 = vmatprep.subr.mxu0 0.0
  %1618 = vmatpush1.msra.mxu0 0.0
  %1619 = vmatprep.subr.mxu0 0.0
  %1620 = vmatpush1.msra.mxu0 0.0
  %1621 = vmatprep.subr.mxu0 0.0
  %1622 = vmatpush1.msra.mxu0 0.0
  %1623 = vmatprep.subr.mxu0 0.0
  %1624 = vmatpush1.msra.mxu0 0.0
  %1625 = vmatprep.subr.mxu0 0.0
  %1626 = vmatpush1.msra.mxu0 0.0
  %1627 = vmatprep.subr.mxu0 0.0
  %1628 = vmatpush1.msra.mxu0 0.0
  %1629 = vmatprep.subr.mxu0 0.0
  %1630 = vmatpush1.msra.mxu0 0.0
  %1631 = vmatprep.subr.mxu0 0.0
  %1632 = vmatpush1.msra.mxu0 0.0
  %1633 = vmatprep.subr.mxu0 0.0
  %1634 = vmatpush1.msra.mxu0 0.0
  %1635 = vmatprep.subr.mxu0 0.0
  %1636 = vmatpush1.msra.mxu0 0.0
  %1637 = vmatprep.subr.mxu0 0.0
  %1638 = vmatpush1.msra.mxu0 0.0
  %1639 = vmatprep.subr.mxu0 0.0
  %1640 = vmatpush1.msra.mxu0 0.0
  %1641 = vmatprep.subr.mxu0 0.0
  %1642 = vmatpush1.msra.mxu0 0.0
  %1643 = vmatprep.subr.mxu0 0.0
  %1644 = vmatpush1.msra.mxu0 0.0
  %1645 = vmatprep.subr.mxu0 0.0
  %1646 = vmatpush1.msra.mxu0 0.0
  %1647 = vmatprep.subr.mxu0 0.0
  %1648 = vmatpush1.msra.mxu0 0.0
  %1649 = vmatprep.subr.mxu0 0.0
  %1650 = vmatpush1.msra.mxu0 0.0
  %1651 = vmatprep.subr.mxu0 0.0
  %1652 = vmatpush1.msra.mxu0 0.0
  %1653 = vmatprep.subr.mxu0 0.0
  %1654 = vmatpush1.msra.mxu0 0.0
  %1655 = vmatprep.subr.mxu0 0.0
  %1656 = vmatpush1.msra.mxu0 0.0
  %1657 = vmatprep.mubr.f32.mxu0 0.0
  %1658 = vmatmul.mubr.f32.gmra.mrb[0].mxu0 %v1591
  %v1659 = vpop.f32.mrb[0].mxu0
  %v1660 = vadd.f32 %v1515, %v1659
  %v1661 = vpop.f32.mrb[0].mxu0
  %v1662 = vadd.f32 %v1517, %v1661
  %1663 = vdwg.mxu0
  %1664 = vmatprep.subr.mxu0 %v1403
  %1665 = vmatpush1.msra.mxu0 %v1402
  %1666 = vmatprep.subr.mxu0 %v1407
  %1667 = vmatpush1.msra.mxu0 %v1406
  %1668 = vmatprep.subr.mxu0 %v1411
  %1669 = vmatpush1.msra.mxu0 %v1410
  %1670 = vmatprep.subr.mxu0 %v1415
  %1671 = vmatpush1.msra.mxu0 %v1414
  %1672 = vmatprep.subr.mxu0 0.0
  %1673 = vmatpush1.msra.mxu0 0.0
  %1674 = vmatprep.subr.mxu0 0.0
  %1675 = vmatpush1.msra.mxu0 0.0
  %1676 = vmatprep.subr.mxu0 0.0
  %1677 = vmatpush1.msra.mxu0 0.0
  %1678 = vmatprep.subr.mxu0 0.0
  %1679 = vmatpush1.msra.mxu0 0.0
  %1680 = vmatprep.subr.mxu0 0.0
  %1681 = vmatpush1.msra.mxu0 0.0
  %1682 = vmatprep.subr.mxu0 0.0
  %1683 = vmatpush1.msra.mxu0 0.0
  %1684 = vmatprep.subr.mxu0 0.0
  %1685 = vmatpush1.msra.mxu0 0.0
  %1686 = vmatprep.subr.mxu0 0.0
  %1687 = vmatpush1.msra.mxu0 0.0
  %1688 = vmatprep.subr.mxu0 0.0
  %1689 = vmatpush1.msra.mxu0 0.0
  %1690 = vmatprep.subr.mxu0 0.0
  %1691 = vmatpush1.msra.mxu0 0.0
  %1692 = vmatprep.subr.mxu0 0.0
  %1693 = vmatpush1.msra.mxu0 0.0
  %1694 = vmatprep.subr.mxu0 0.0
  %1695 = vmatpush1.msra.mxu0 0.0
  %1696 = vmatprep.subr.mxu0 0.0
  %1697 = vmatpush1.msra.mxu0 0.0
  %1698 = vmatprep.subr.mxu0 0.0
  %1699 = vmatpush1.msra.mxu0 0.0
  %1700 = vmatprep.subr.mxu0 0.0
  %1701 = vmatpush1.msra.mxu0 0.0
  %1702 = vmatprep.subr.mxu0 0.0
  %1703 = vmatpush1.msra.mxu0 0.0
  %1704 = vmatprep.subr.mxu0 0.0
  %1705 = vmatpush1.msra.mxu0 0.0
  %1706 = vmatprep.subr.mxu0 0.0
  %1707 = vmatpush1.msra.mxu0 0.0
  %1708 = vmatprep.subr.mxu0 0.0
  %1709 = vmatpush1.msra.mxu0 0.0
  %1710 = vmatprep.subr.mxu0 0.0
  %1711 = vmatpush1.msra.mxu0 0.0
  %1712 = vmatprep.subr.mxu0 0.0
  %1713 = vmatpush1.msra.mxu0 0.0
  %1714 = vmatprep.subr.mxu0 0.0
  %1715 = vmatpush1.msra.mxu0 0.0
  %1716 = vmatprep.subr.mxu0 0.0
  %1717 = vmatpush1.msra.mxu0 0.0
  %1718 = vmatprep.subr.mxu0 0.0
  %1719 = vmatpush1.msra.mxu0 0.0
  %1720 = vmatprep.subr.mxu0 0.0
  %1721 = vmatpush1.msra.mxu0 0.0
  %1722 = vmatprep.subr.mxu0 0.0
  %1723 = vmatpush1.msra.mxu0 0.0
  %1724 = vmatprep.subr.mxu0 0.0
  %1725 = vmatpush1.msra.mxu0 0.0
  %1726 = vmatprep.subr.mxu0 0.0
  %1727 = vmatpush1.msra.mxu0 0.0
  %1728 = vmatprep.mubr.f32.mxu0 0.0
  %1729 = vmatmul.mubr.f32.gmra.mrb[0].mxu0 %v1591
  %v1730 = vpop.f32.mrb[0].mxu0
  %v1731 = vadd.f32 %v1586, %v1730
  %v1732 = vpop.f32.mrb[0].mxu0
  %v1733 = vadd.f32 %v1588, %v1732
  %1734 = vdwg.mxu0
  %v1735 = vld [vmem:[%s16] sm:$0xf]
  %v1737 = vlaneseq
  %v1738 = vshrl.u32 %v1737, 7
  %v1739 = vsub.s32 0, %v1738
  %v1740 = vrot.slane %v1735, %v1739
  %v1741 = vlaneseq
  %v1742 = vshrl.u32 %v1741, 7
  %v1743 = vsub.s32 1, %v1742
  %v1744 = vrot.slane %v1735, %v1743
  %v1745 = vlaneseq
  %v1746 = vshrl.u32 %v1745, 7
  %v1747 = vsub.s32 2, %v1746
  %v1748 = vrot.slane %v1735, %v1747
  %v1749 = vlaneseq
  %v1750 = vshrl.u32 %v1749, 7
  %v1751 = vsub.s32 3, %v1750
  %v1752 = vrot.slane %v1735, %v1751
  %v1757 = vadd.f32 %v1660, %v1740
  %v1758 = vadd.f32 %v1662, %v1744
  %v1759 = vadd.f32 %v1731, %v1748
  %v1760 = vadd.f32 %v1733, %v1752
  %v1761 = vmax.f32 %v1757, 0.0
  %v1762 = vmax.f32 %v1758, 0.0
  %v1763 = vmax.f32 %v1759, 0.0
  %v1764 = vmax.f32 %v1760, 0.0
  %v1765 = vld [vmem:[%s17] sm:$0xff]
  %v1766 = vld [vmem:[%s17 + $0x8] sm:$0xff]
  %v1767 = vld [vmem:[%s17 + $0x10] sm:$0xff]
  %v1768 = vld [vmem:[%s17 + $0x18] sm:$0xff]
  %v1769 = vld [vmem:[%s17 + $0x20] sm:$0xff]
  %v1770 = vld [vmem:[%s17 + $0x28] sm:$0xff]
  %v1771 = vld [vmem:[%s17 + $0x30] sm:$0xff]
  %v1772 = vld [vmem:[%s17 + $0x38] sm:$0xff]
  %v1773 = vld [vmem:[%s17 + $0x40] sm:$0xff]
  %v1774 = vld [vmem:[%s17 + $0x48] sm:$0xff]
  %v1775 = vld [vmem:[%s17 + $0x50] sm:$0xff]
  %v1776 = vld [vmem:[%s17 + $0x58] sm:$0xff]
  %v1777 = vld [vmem:[%s17 + $0x60] sm:$0xff]
  %v1778 = vld [vmem:[%s17 + $0x68] sm:$0xff]
  %v1779 = vld [vmem:[%s17 + $0x70] sm:$0xff]
  %v1780 = vld [vmem:[%s17 + $0x78] sm:$0xff]
  %v1781 = vld [vmem:[%s17 + $0x80] sm:$0xff]
  %v1782 = vld [vmem:[%s17 + $0x88] sm:$0xff]
  %v1783 = vld [vmem:[%s17 + $0x90] sm:$0xff]
  %v1784 = vld [vmem:[%s17 + $0x98] sm:$0xff]
  %v1785 = vld [vmem:[%s17 + $0xa0] sm:$0xff]
  %v1786 = vld [vmem:[%s17 + $0xa8] sm:$0xff]
  %v1787 = vld [vmem:[%s17 + $0xb0] sm:$0xff]
  %v1788 = vld [vmem:[%s17 + $0xb8] sm:$0xff]
  %v1789 = vld [vmem:[%s17 + $0xc0] sm:$0xff]
  %v1790 = vld [vmem:[%s17 + $0xc8] sm:$0xff]
  %v1791 = vld [vmem:[%s17 + $0xd0] sm:$0xff]
  %v1792 = vld [vmem:[%s17 + $0xd8] sm:$0xff]
  %v1793 = vld [vmem:[%s17 + $0xe0] sm:$0xff]
  %v1794 = vld [vmem:[%s17 + $0xe8] sm:$0xff]
  %v1795 = vld [vmem:[%s17 + $0xf0] sm:$0xff]
  %v1796 = vld [vmem:[%s17 + $0xf8] sm:$0xff]
  %v1797 = vld [vmem:[%s17 + $0x100] sm:$0xff]
  %v1798 = vld [vmem:[%s17 + $0x108] sm:$0xff]
  %v1799 = vld [vmem:[%s17 + $0x110] sm:$0xff]
  %v1800 = vld [vmem:[%s17 + $0x118] sm:$0xff]
  %v1801 = vld [vmem:[%s17 + $0x120] sm:$0xff]
  %v1802 = vld [vmem:[%s17 + $0x128] sm:$0xff]
  %v1803 = vld [vmem:[%s17 + $0x130] sm:$0xff]
  %v1804 = vld [vmem:[%s17 + $0x138] sm:$0xff]
  %v1805 = vld [vmem:[%s17 + $0x140] sm:$0xff]
  %v1806 = vld [vmem:[%s17 + $0x148] sm:$0xff]
  %v1807 = vld [vmem:[%s17 + $0x150] sm:$0xff]
  %v1808 = vld [vmem:[%s17 + $0x158] sm:$0xff]
  %v1809 = vld [vmem:[%s17 + $0x160] sm:$0xff]
  %v1810 = vld [vmem:[%s17 + $0x168] sm:$0xff]
  %v1811 = vld [vmem:[%s17 + $0x170] sm:$0xff]
  %v1812 = vld [vmem:[%s17 + $0x178] sm:$0xff]
  %v1813 = vld [vmem:[%s17 + $0x180] sm:$0xff]
  %v1814 = vld [vmem:[%s17 + $0x188] sm:$0xff]
  %v1815 = vld [vmem:[%s17 + $0x190] sm:$0xff]
  %v1816 = vld [vmem:[%s17 + $0x198] sm:$0xff]
  %v1817 = vld [vmem:[%s17 + $0x1a0] sm:$0xff]
  %v1818 = vld [vmem:[%s17 + $0x1a8] sm:$0xff]
  %v1819 = vld [vmem:[%s17 + $0x1b0] sm:$0xff]
  %v1820 = vld [vmem:[%s17 + $0x1b8] sm:$0xff]
  %v1821 = vld [vmem:[%s17 + $0x1c0] sm:$0xff]
  %v1822 = vld [vmem:[%s17 + $0x1c8] sm:$0xff]
  %v1823 = vld [vmem:[%s17 + $0x1d0] sm:$0xff]
  %v1824 = vld [vmem:[%s17 + $0x1d8] sm:$0xff]
  %v1825 = vld [vmem:[%s17 + $0x1e0] sm:$0xff]
  %v1826 = vld [vmem:[%s17 + $0x1e8] sm:$0xff]
  %v1827 = vld [vmem:[%s17 + $0x1f0] sm:$0xff]
  %v1828 = vld [vmem:[%s17 + $0x1f8] sm:$0xff]
  %v1829 = vld [vmem:[%s18] sm:$0x3]
  %v1831 = vlaneseq
  %v1832 = vshrl.u32 %v1831, 7
  %v1833 = vsub.s32 0, %v1832
  %v1834 = vrot.slane %v1829, %v1833
  %v1835 = vlaneseq
  %v1836 = vshrl.u32 %v1835, 7
  %v1837 = vsub.s32 1, %v1836
  %v1838 = vrot.slane %v1829, %v1837
  %1841 = vmatprep.subr.mxu0 %v1766
  %1842 = vmatpush1.msra.mxu0 %v1765
  %1843 = vmatprep.subr.mxu0 %v1768
  %1844 = vmatpush1.msra.mxu0 %v1767
  %1845 = vmatprep.subr.mxu0 %v1770
  %1846 = vmatpush1.msra.mxu0 %v1769
  %1847 = vmatprep.subr.mxu0 %v1772
  %1848 = vmatpush1.msra.mxu0 %v1771
  %1849 = vmatprep.subr.mxu0 %v1774
  %1850 = vmatpush1.msra.mxu0 %v1773
  %1851 = vmatprep.subr.mxu0 %v1776
  %1852 = vmatpush1.msra.mxu0 %v1775
  %1853 = vmatprep.subr.mxu0 %v1778
  %1854 = vmatpush1.msra.mxu0 %v1777
  %1855 = vmatprep.subr.mxu0 %v1780
  %1856 = vmatpush1.msra.mxu0 %v1779
  %1857 = vmatprep.subr.mxu0 %v1782
  %1858 = vmatpush1.msra.mxu0 %v1781
  %1859 = vmatprep.subr.mxu0 %v1784
  %1860 = vmatpush1.msra.mxu0 %v1783
  %1861 = vmatprep.subr.mxu0 %v1786
  %1862 = vmatpush1.msra.mxu0 %v1785
  %1863 = vmatprep.subr.mxu0 %v1788
  %1864 = vmatpush1.msra.mxu0 %v1787
  %1865 = vmatprep.subr.mxu0 %v1790
  %1866 = vmatpush1.msra.mxu0 %v1789
  %1867 = vmatprep.subr.mxu0 %v1792
  %1868 = vmatpush1.msra.mxu0 %v1791
  %1869 = vmatprep.subr.mxu0 %v1794
  %1870 = vmatpush1.msra.mxu0 %v1793
  %1871 = vmatprep.subr.mxu0 %v1796
  %1872 = vmatpush1.msra.mxu0 %v1795
  %1873 = vmatprep.subr.mxu0 %v1798
  %1874 = vmatpush1.msra.mxu0 %v1797
  %1875 = vmatprep.subr.mxu0 %v1800
  %1876 = vmatpush1.msra.mxu0 %v1799
  %1877 = vmatprep.subr.mxu0 %v1802
  %1878 = vmatpush1.msra.mxu0 %v1801
  %1879 = vmatprep.subr.mxu0 %v1804
  %1880 = vmatpush1.msra.mxu0 %v1803
  %1881 = vmatprep.subr.mxu0 %v1806
  %1882 = vmatpush1.msra.mxu0 %v1805
  %1883 = vmatprep.subr.mxu0 %v1808
  %1884 = vmatpush1.msra.mxu0 %v1807
  %1885 = vmatprep.subr.mxu0 %v1810
  %1886 = vmatpush1.msra.mxu0 %v1809
  %1887 = vmatprep.subr.mxu0 %v1812
  %1888 = vmatpush1.msra.mxu0 %v1811
  %1889 = vmatprep.subr.mxu0 %v1814
  %1890 = vmatpush1.msra.mxu0 %v1813
  %1891 = vmatprep.subr.mxu0 %v1816
  %1892 = vmatpush1.msra.mxu0 %v1815
  %1893 = vmatprep.subr.mxu0 %v1818
  %1894 = vmatpush1.msra.mxu0 %v1817
  %1895 = vmatprep.subr.mxu0 %v1820
  %1896 = vmatpush1.msra.mxu0 %v1819
  %1897 = vmatprep.subr.mxu0 %v1822
  %1898 = vmatpush1.msra.mxu0 %v1821
  %1899 = vmatprep.subr.mxu0 %v1824
  %1900 = vmatpush1.msra.mxu0 %v1823
  %1901 = vmatprep.subr.mxu0 %v1826
  %1902 = vmatpush1.msra.mxu0 %v1825
  %1903 = vmatprep.subr.mxu0 %v1828
  %1904 = vmatpush1.msra.mxu0 %v1827
  %1905 = vmatprep.mubr.f32.mxu0 %v1762
  %1906 = vmatmul.mubr.f32.gmra.mrb[0].mxu0 %v1761
  %v1907 = vpop.f32.mrb[0].mxu0
  %v1908 = vadd.f32 %v1834, %v1907
  %v1909 = vpop.f32.mrb[0].mxu0
  %v1910 = vadd.f32 %v1838, %v1909
  %1911 = vdwg.mxu0
  %v1912 = vmax.f32 %v1908, 0.0
  %v1913 = vmax.f32 %v1910, 0.0
  %v1914 = vld [vmem:[%s19] sm:$0xff]
  %v1915 = vld [vmem:[%s19 + $0x8] sm:$0xff]
  %v1916 = vld [vmem:[%s19 + $0x10] sm:$0xff]
  %v1917 = vld [vmem:[%s19 + $0x18] sm:$0xff]
  %v1918 = vld [vmem:[%s19 + $0x20] sm:$0xff]
  %v1919 = vld [vmem:[%s19 + $0x28] sm:$0xff]
  %v1920 = vld [vmem:[%s19 + $0x30] sm:$0xff]
  %v1921 = vld [vmem:[%s19 + $0x38] sm:$0xff]
  %v1922 = vld [vmem:[%s19 + $0x40] sm:$0xff]
  %v1923 = vld [vmem:[%s19 + $0x48] sm:$0xff]
  %v1924 = vld [vmem:[%s19 + $0x50] sm:$0xff]
  %v1925 = vld [vmem:[%s19 + $0x58] sm:$0xff]
  %v1926 = vld [vmem:[%s19 + $0x60] sm:$0xff]
  %v1927 = vld [vmem:[%s19 + $0x68] sm:$0xff]
  %v1928 = vld [vmem:[%s19 + $0x70] sm:$0xff]
  %v1929 = vld [vmem:[%s19 + $0x78] sm:$0xff]
  %v1930 = vld [vmem:[%s19 + $0x80] sm:$0xff]
  %v1931 = vld [vmem:[%s19 + $0x88] sm:$0xff]
  %v1932 = vld [vmem:[%s19 + $0x90] sm:$0xff]
  %v1933 = vld [vmem:[%s19 + $0x98] sm:$0xff]
  %v1934 = vld [vmem:[%s19 + $0xa0] sm:$0xff]
  %v1935 = vld [vmem:[%s19 + $0xa8] sm:$0xff]
  %v1936 = vld [vmem:[%s19 + $0xb0] sm:$0xff]
  %v1937 = vld [vmem:[%s19 + $0xb8] sm:$0xff]
  %v1938 = vld [vmem:[%s19 + $0xc0] sm:$0xff]
  %v1939 = vld [vmem:[%s19 + $0xc8] sm:$0xff]
  %v1940 = vld [vmem:[%s19 + $0xd0] sm:$0xff]
  %v1941 = vld [vmem:[%s19 + $0xd8] sm:$0xff]
  %v1942 = vld [vmem:[%s19 + $0xe0] sm:$0xff]
  %v1943 = vld [vmem:[%s19 + $0xe8] sm:$0xff]
  %v1944 = vld [vmem:[%s19 + $0xf0] sm:$0xff]
  %v1945 = vld [vmem:[%s19 + $0xf8] sm:$0xff]
  %v1946 = vld [vmem:[%s19 + $0x100] sm:$0xff]
  %v1947 = vld [vmem:[%s19 + $0x108] sm:$0xff]
  %v1948 = vld [vmem:[%s19 + $0x110] sm:$0xff]
  %v1949 = vld [vmem:[%s19 + $0x118] sm:$0xff]
  %v1950 = vld [vmem:[%s19 + $0x120] sm:$0xff]
  %v1951 = vld [vmem:[%s19 + $0x128] sm:$0xff]
  %v1952 = vld [vmem:[%s19 + $0x130] sm:$0xff]
  %v1953 = vld [vmem:[%s19 + $0x138] sm:$0xff]
  %v1954 = vld [vmem:[%s19 + $0x140] sm:$0xff]
  %v1955 = vld [vmem:[%s19 + $0x148] sm:$0xff]
  %v1956 = vld [vmem:[%s19 + $0x150] sm:$0xff]
  %v1957 = vld [vmem:[%s19 + $0x158] sm:$0xff]
  %v1958 = vld [vmem:[%s19 + $0x160] sm:$0xff]
  %v1959 = vld [vmem:[%s19 + $0x168] sm:$0xff]
  %v1960 = vld [vmem:[%s19 + $0x170] sm:$0xff]
  %v1961 = vld [vmem:[%s19 + $0x178] sm:$0xff]
  %v1962 = vld [vmem:[%s19 + $0x180] sm:$0xff]
  %v1963 = vld [vmem:[%s19 + $0x188] sm:$0xff]
  %v1964 = vld [vmem:[%s19 + $0x190] sm:$0xff]
  %v1965 = vld [vmem:[%s19 + $0x198] sm:$0xff]
  %v1966 = vld [vmem:[%s19 + $0x1a0] sm:$0xff]
  %v1967 = vld [vmem:[%s19 + $0x1a8] sm:$0xff]
  %v1968 = vld [vmem:[%s19 + $0x1b0] sm:$0xff]
  %v1969 = vld [vmem:[%s19 + $0x1b8] sm:$0xff]
  %v1970 = vld [vmem:[%s19 + $0x1c0] sm:$0xff]
  %v1971 = vld [vmem:[%s19 + $0x1c8] sm:$0xff]
  %v1972 = vld [vmem:[%s19 + $0x1d0] sm:$0xff]
  %v1973 = vld [vmem:[%s19 + $0x1d8] sm:$0xff]
  %v1974 = vld [vmem:[%s19 + $0x1e0] sm:$0xff]
  %v1975 = vld [vmem:[%s19 + $0x1e8] sm:$0xff]
  %v1976 = vld [vmem:[%s19 + $0x1f0] sm:$0xff]
  %v1977 = vld [vmem:[%s19 + $0x1f8] sm:$0xff]
  %v1978 = vld [vmem:[%s20] sm:$0x3]
  %v1980 = vlaneseq
  %v1981 = vshrl.u32 %v1980, 7
  %v1982 = vsub.s32 0, %v1981
  %v1983 = vrot.slane %v1978, %v1982
  %v1984 = vlaneseq
  %v1985 = vshrl.u32 %v1984, 7
  %v1986 = vsub.s32 1, %v1985
  %v1987 = vrot.slane %v1978, %v1986
  %1990 = vmatprep.subr.mxu0 %v1915
  %1991 = vmatpush1.msra.mxu0 %v1914
  %1992 = vmatprep.subr.mxu0 %v1917
  %1993 = vmatpush1.msra.mxu0 %v1916
  %1994 = vmatprep.subr.mxu0 %v1919
  %1995 = vmatpush1.msra.mxu0 %v1918
  %1996 = vmatprep.subr.mxu0 %v1921
  %1997 = vmatpush1.msra.mxu0 %v1920
  %1998 = vmatprep.subr.mxu0 %v1923
  %1999 = vmatpush1.msra.mxu0 %v1922
  %2000 = vmatprep.subr.mxu0 %v1925
  %2001 = vmatpush1.msra.mxu0 %v1924
  %2002 = vmatprep.subr.mxu0 %v1927
  %2003 = vmatpush1.msra.mxu0 %v1926
  %2004 = vmatprep.subr.mxu0 %v1929
  %2005 = vmatpush1.msra.mxu0 %v1928
  %2006 = vmatprep.subr.mxu0 %v1931
  %2007 = vmatpush1.msra.mxu0 %v1930
  %2008 = vmatprep.subr.mxu0 %v1933
  %2009 = vmatpush1.msra.mxu0 %v1932
  %2010 = vmatprep.subr.mxu0 %v1935
  %2011 = vmatpush1.msra.mxu0 %v1934
  %2012 = vmatprep.subr.mxu0 %v1937
  %2013 = vmatpush1.msra.mxu0 %v1936
  %2014 = vmatprep.subr.mxu0 %v1939
  %2015 = vmatpush1.msra.mxu0 %v1938
  %2016 = vmatprep.subr.mxu0 %v1941
  %2017 = vmatpush1.msra.mxu0 %v1940
  %2018 = vmatprep.subr.mxu0 %v1943
  %2019 = vmatpush1.msra.mxu0 %v1942
  %2020 = vmatprep.subr.mxu0 %v1945
  %2021 = vmatpush1.msra.mxu0 %v1944
  %2022 = vmatprep.subr.mxu0 %v1947
  %2023 = vmatpush1.msra.mxu0 %v1946
  %2024 = vmatprep.subr.mxu0 %v1949
  %2025 = vmatpush1.msra.mxu0 %v1948
  %2026 = vmatprep.subr.mxu0 %v1951
  %2027 = vmatpush1.msra.mxu0 %v1950
  %2028 = vmatprep.subr.mxu0 %v1953
  %2029 = vmatpush1.msra.mxu0 %v1952
  %2030 = vmatprep.subr.mxu0 %v1955
  %2031 = vmatpush1.msra.mxu0 %v1954
  %2032 = vmatprep.subr.mxu0 %v1957
  %2033 = vmatpush1.msra.mxu0 %v1956
  %2034 = vmatprep.subr.mxu0 %v1959
  %2035 = vmatpush1.msra.mxu0 %v1958
  %2036 = vmatprep.subr.mxu0 %v1961
  %2037 = vmatpush1.msra.mxu0 %v1960
  %2038 = vmatprep.subr.mxu0 %v1963
  %2039 = vmatpush1.msra.mxu0 %v1962
  %2040 = vmatprep.subr.mxu0 %v1965
  %2041 = vmatpush1.msra.mxu0 %v1964
  %2042 = vmatprep.subr.mxu0 %v1967
  %2043 = vmatpush1.msra.mxu0 %v1966
  %2044 = vmatprep.subr.mxu0 %v1969
  %2045 = vmatpush1.msra.mxu0 %v1968
  %2046 = vmatprep.subr.mxu0 %v1971
  %2047 = vmatpush1.msra.mxu0 %v1970
  %2048 = vmatprep.subr.mxu0 %v1973
  %2049 = vmatpush1.msra.mxu0 %v1972
  %2050 = vmatprep.subr.mxu0 %v1975
  %2051 = vmatpush1.msra.mxu0 %v1974
  %2052 = vmatprep.subr.mxu0 %v1977
  %2053 = vmatpush1.msra.mxu0 %v1976
  %2054 = vmatprep.mubr.f32.mxu0 %v1764
  %2055 = vmatmul.mubr.f32.gmra.mrb[0].mxu0 %v1763
  %v2056 = vpop.f32.mrb[0].mxu0
  %v2057 = vadd.f32 %v1983, %v2056
  %v2058 = vpop.f32.mrb[0].mxu0
  %v2059 = vadd.f32 %v1987, %v2058
  %2060 = vdwg.mxu0
  %v2061 = vmax.f32 %v2057, 0.0
  %v2062 = vmax.f32 %v2059, 0.0
  %v2063 = vld [vmem:[%s21] sm:$0xff]
  %v2064 = vld [vmem:[%s21 + $0x8] sm:$0xff]
  %v2065 = vld [vmem:[%s21 + $0x10] sm:$0xff]
  %v2066 = vld [vmem:[%s21 + $0x18] sm:$0xff]
  %v2067 = vld [vmem:[%s21 + $0x20] sm:$0xff]
  %v2068 = vld [vmem:[%s21 + $0x28] sm:$0xff]
  %v2069 = vld [vmem:[%s21 + $0x30] sm:$0xff]
  %v2070 = vld [vmem:[%s21 + $0x38] sm:$0xff]
  %v2071 = vld [vmem:[%s21 + $0x40] sm:$0xff]
  %v2072 = vld [vmem:[%s21 + $0x48] sm:$0xff]
  %v2073 = vld [vmem:[%s21 + $0x50] sm:$0xff]
  %v2074 = vld [vmem:[%s21 + $0x58] sm:$0xff]
  %v2075 = vld [vmem:[%s21 + $0x60] sm:$0xff]
  %v2076 = vld [vmem:[%s21 + $0x68] sm:$0xff]
  %v2077 = vld [vmem:[%s21 + $0x70] sm:$0xff]
  %v2078 = vld [vmem:[%s21 + $0x78] sm:$0xff]
  %v2079 = vld [vmem:[%s21 + $0x80] sm:$0xff]
  %v2080 = vld [vmem:[%s21 + $0x88] sm:$0xff]
  %v2081 = vld [vmem:[%s21 + $0x90] sm:$0xff]
  %v2082 = vld [vmem:[%s21 + $0x98] sm:$0xff]
  %v2083 = vld [vmem:[%s21 + $0xa0] sm:$0xff]
  %v2084 = vld [vmem:[%s21 + $0xa8] sm:$0xff]
  %v2085 = vld [vmem:[%s21 + $0xb0] sm:$0xff]
  %v2086 = vld [vmem:[%s21 + $0xb8] sm:$0xff]
  %v2087 = vld [vmem:[%s21 + $0xc0] sm:$0xff]
  %v2088 = vld [vmem:[%s21 + $0xc8] sm:$0xff]
  %v2089 = vld [vmem:[%s21 + $0xd0] sm:$0xff]
  %v2090 = vld [vmem:[%s21 + $0xd8] sm:$0xff]
  %v2091 = vld [vmem:[%s21 + $0xe0] sm:$0xff]
  %v2092 = vld [vmem:[%s21 + $0xe8] sm:$0xff]
  %v2093 = vld [vmem:[%s21 + $0xf0] sm:$0xff]
  %v2094 = vld [vmem:[%s21 + $0xf8] sm:$0xff]
  %v2095 = vld [vmem:[#allocation2] sm:$0x1]
  %v2097 = vlaneseq
  %v2098 = vshrl.u32 %v2097, 7
  %v2099 = vsub.s32 0, %v2098
  %v2100 = vrot.slane %v2095, %v2099
  %2102 = vmatprep.subr.mxu0 0.0
  %2103 = vmatpush1.msra.mxu0 %v2063
  %2104 = vmatprep.subr.mxu0 0.0
  %2105 = vmatpush1.msra.mxu0 %v2064
  %2106 = vmatprep.subr.mxu0 0.0
  %2107 = vmatpush1.msra.mxu0 %v2065
  %2108 = vmatprep.subr.mxu0 0.0
  %2109 = vmatpush1.msra.mxu0 %v2066
  %2110 = vmatprep.subr.mxu0 0.0
  %2111 = vmatpush1.msra.mxu0 %v2067
  %2112 = vmatprep.subr.mxu0 0.0
  %2113 = vmatpush1.msra.mxu0 %v2068
  %2114 = vmatprep.subr.mxu0 0.0
  %2115 = vmatpush1.msra.mxu0 %v2069
  %2116 = vmatprep.subr.mxu0 0.0
  %2117 = vmatpush1.msra.mxu0 %v2070
  %2118 = vmatprep.subr.mxu0 0.0
  %2119 = vmatpush1.msra.mxu0 %v2071
  %2120 = vmatprep.subr.mxu0 0.0
  %2121 = vmatpush1.msra.mxu0 %v2072
  %2122 = vmatprep.subr.mxu0 0.0
  %2123 = vmatpush1.msra.mxu0 %v2073
  %2124 = vmatprep.subr.mxu0 0.0
  %2125 = vmatpush1.msra.mxu0 %v2074
  %2126 = vmatprep.subr.mxu0 0.0
  %2127 = vmatpush1.msra.mxu0 %v2075
  %2128 = vmatprep.subr.mxu0 0.0
  %2129 = vmatpush1.msra.mxu0 %v2076
  %2130 = vmatprep.subr.mxu0 0.0
  %2131 = vmatpush1.msra.mxu0 %v2077
  %2132 = vmatprep.subr.mxu0 0.0
  %2133 = vmatpush1.msra.mxu0 %v2078
  %2134 = vmatprep.subr.mxu0 0.0
  %2135 = vmatpush1.msra.mxu0 %v2079
  %2136 = vmatprep.subr.mxu0 0.0
  %2137 = vmatpush1.msra.mxu0 %v2080
  %2138 = vmatprep.subr.mxu0 0.0
  %2139 = vmatpush1.msra.mxu0 %v2081
  %2140 = vmatprep.subr.mxu0 0.0
  %2141 = vmatpush1.msra.mxu0 %v2082
  %2142 = vmatprep.subr.mxu0 0.0
  %2143 = vmatpush1.msra.mxu0 %v2083
  %2144 = vmatprep.subr.mxu0 0.0
  %2145 = vmatpush1.msra.mxu0 %v2084
  %2146 = vmatprep.subr.mxu0 0.0
  %2147 = vmatpush1.msra.mxu0 %v2085
  %2148 = vmatprep.subr.mxu0 0.0
  %2149 = vmatpush1.msra.mxu0 %v2086
  %2150 = vmatprep.subr.mxu0 0.0
  %2151 = vmatpush1.msra.mxu0 %v2087
  %2152 = vmatprep.subr.mxu0 0.0
  %2153 = vmatpush1.msra.mxu0 %v2088
  %2154 = vmatprep.subr.mxu0 0.0
  %2155 = vmatpush1.msra.mxu0 %v2089
  %2156 = vmatprep.subr.mxu0 0.0
  %2157 = vmatpush1.msra.mxu0 %v2090
  %2158 = vmatprep.subr.mxu0 0.0
  %2159 = vmatpush1.msra.mxu0 %v2091
  %2160 = vmatprep.subr.mxu0 0.0
  %2161 = vmatpush1.msra.mxu0 %v2092
  %2162 = vmatprep.subr.mxu0 0.0
  %2163 = vmatpush1.msra.mxu0 %v2093
  %2164 = vmatprep.subr.mxu0 0.0
  %2165 = vmatpush1.msra.mxu0 %v2094
  %2166 = vmatprep.mubr.f32.mxu0 %v1913
  %2167 = vmatmul.mubr.f32.gmra.mrb[0].mxu0 %v1912
  %v2168 = vpop.f32.mrb[0].mxu0
  %v2169 = vadd.f32 %v2100, %v2168
  %v2170 = vpop.f32.mrb[0].mxu0
  %2171 = vdwg.mxu0
  %v2172 = vld [vmem:[%s23] sm:$0xff]
  %v2173 = vld [vmem:[%s23 + $0x8] sm:$0xff]
  %v2174 = vld [vmem:[%s23 + $0x10] sm:$0xff]
  %v2175 = vld [vmem:[%s23 + $0x18] sm:$0xff]
  %v2176 = vld [vmem:[%s23 + $0x20] sm:$0xff]
  %v2177 = vld [vmem:[%s23 + $0x28] sm:$0xff]
  %v2178 = vld [vmem:[%s23 + $0x30] sm:$0xff]
  %v2179 = vld [vmem:[%s23 + $0x38] sm:$0xff]
  %v2180 = vld [vmem:[%s23 + $0x40] sm:$0xff]
  %v2181 = vld [vmem:[%s23 + $0x48] sm:$0xff]
  %v2182 = vld [vmem:[%s23 + $0x50] sm:$0xff]
  %v2183 = vld [vmem:[%s23 + $0x58] sm:$0xff]
  %v2184 = vld [vmem:[%s23 + $0x60] sm:$0xff]
  %v2185 = vld [vmem:[%s23 + $0x68] sm:$0xff]
  %v2186 = vld [vmem:[%s23 + $0x70] sm:$0xff]
  %v2187 = vld [vmem:[%s23 + $0x78] sm:$0xff]
  %v2188 = vld [vmem:[%s23 + $0x80] sm:$0xff]
  %v2189 = vld [vmem:[%s23 + $0x88] sm:$0xff]
  %v2190 = vld [vmem:[%s23 + $0x90] sm:$0xff]
  %v2191 = vld [vmem:[%s23 + $0x98] sm:$0xff]
  %v2192 = vld [vmem:[%s23 + $0xa0] sm:$0xff]
  %v2193 = vld [vmem:[%s23 + $0xa8] sm:$0xff]
  %v2194 = vld [vmem:[%s23 + $0xb0] sm:$0xff]
  %v2195 = vld [vmem:[%s23 + $0xb8] sm:$0xff]
  %v2196 = vld [vmem:[%s23 + $0xc0] sm:$0xff]
  %v2197 = vld [vmem:[%s23 + $0xc8] sm:$0xff]
  %v2198 = vld [vmem:[%s23 + $0xd0] sm:$0xff]
  %v2199 = vld [vmem:[%s23 + $0xd8] sm:$0xff]
  %v2200 = vld [vmem:[%s23 + $0xe0] sm:$0xff]
  %v2201 = vld [vmem:[%s23 + $0xe8] sm:$0xff]
  %v2202 = vld [vmem:[%s23 + $0xf0] sm:$0xff]
  %v2203 = vld [vmem:[%s23 + $0xf8] sm:$0xff]
  %v2204 = vld [vmem:[#allocation3] sm:$0x1]
  %v2206 = vlaneseq
  %v2207 = vshrl.u32 %v2206, 7
  %v2208 = vsub.s32 0, %v2207
  %v2209 = vrot.slane %v2204, %v2208
  %2211 = vmatprep.subr.mxu0 0.0
  %2212 = vmatpush1.msra.mxu0 %v2172
  %2213 = vmatprep.subr.mxu0 0.0
  %2214 = vmatpush1.msra.mxu0 %v2173
  %2215 = vmatprep.subr.mxu0 0.0
  %2216 = vmatpush1.msra.mxu0 %v2174
  %2217 = vmatprep.subr.mxu0 0.0
  %2218 = vmatpush1.msra.mxu0 %v2175
  %2219 = vmatprep.subr.mxu0 0.0
  %2220 = vmatpush1.msra.mxu0 %v2176
  %2221 = vmatprep.subr.mxu0 0.0
  %2222 = vmatpush1.msra.mxu0 %v2177
  %2223 = vmatprep.subr.mxu0 0.0
  %2224 = vmatpush1.msra.mxu0 %v2178
  %2225 = vmatprep.subr.mxu0 0.0
  %2226 = vmatpush1.msra.mxu0 %v2179
  %2227 = vmatprep.subr.mxu0 0.0
  %2228 = vmatpush1.msra.mxu0 %v2180
  %2229 = vmatprep.subr.mxu0 0.0
  %2230 = vmatpush1.msra.mxu0 %v2181
  %2231 = vmatprep.subr.mxu0 0.0
  %2232 = vmatpush1.msra.mxu0 %v2182
  %2233 = vmatprep.subr.mxu0 0.0
  %2234 = vmatpush1.msra.mxu0 %v2183
  %2235 = vmatprep.subr.mxu0 0.0
  %2236 = vmatpush1.msra.mxu0 %v2184
  %2237 = vmatprep.subr.mxu0 0.0
  %2238 = vmatpush1.msra.mxu0 %v2185
  %2239 = vmatprep.subr.mxu0 0.0
  %2240 = vmatpush1.msra.mxu0 %v2186
  %2241 = vmatprep.subr.mxu0 0.0
  %2242 = vmatpush1.msra.mxu0 %v2187
  %2243 = vmatprep.subr.mxu0 0.0
  %2244 = vmatpush1.msra.mxu0 %v2188
  %2245 = vmatprep.subr.mxu0 0.0
  %2246 = vmatpush1.msra.mxu0 %v2189
  %2247 = vmatprep.subr.mxu0 0.0
  %2248 = vmatpush1.msra.mxu0 %v2190
  %2249 = vmatprep.subr.mxu0 0.0
  %2250 = vmatpush1.msra.mxu0 %v2191
  %2251 = vmatprep.subr.mxu0 0.0
  %2252 = vmatpush1.msra.mxu0 %v2192
  %2253 = vmatprep.subr.mxu0 0.0
  %2254 = vmatpush1.msra.mxu0 %v2193
  %2255 = vmatprep.subr.mxu0 0.0
  %2256 = vmatpush1.msra.mxu0 %v2194
  %2257 = vmatprep.subr.mxu0 0.0
  %2258 = vmatpush1.msra.mxu0 %v2195
  %2259 = vmatprep.subr.mxu0 0.0
  %2260 = vmatpush1.msra.mxu0 %v2196
  %2261 = vmatprep.subr.mxu0 0.0
  %2262 = vmatpush1.msra.mxu0 %v2197
  %2263 = vmatprep.subr.mxu0 0.0
  %2264 = vmatpush1.msra.mxu0 %v2198
  %2265 = vmatprep.subr.mxu0 0.0
  %2266 = vmatpush1.msra.mxu0 %v2199
  %2267 = vmatprep.subr.mxu0 0.0
  %2268 = vmatpush1.msra.mxu0 %v2200
  %2269 = vmatprep.subr.mxu0 0.0
  %2270 = vmatpush1.msra.mxu0 %v2201
  %2271 = vmatprep.subr.mxu0 0.0
  %2272 = vmatpush1.msra.mxu0 %v2202
  %2273 = vmatprep.subr.mxu0 0.0
  %2274 = vmatpush1.msra.mxu0 %v2203
  %2275 = vmatprep.mubr.f32.mxu0 %v2062
  %2276 = vmatmul.mubr.f32.gmra.mrb[0].mxu0 %v2061
  %v2277 = vpop.f32.mrb[0].mxu0
  %v2278 = vadd.f32 %v2209, %v2277
  %v2279 = vpop.f32.mrb[0].mxu0
  %2280 = vdwg.mxu0
  %2282 = vrot.lane.b32.xlu0 %v2278, 1
  %v2283 = vpop.permute.xlu0 %2282
  %vm2285 = vcmask 7168
  %v2286 = vsel %vm2285, %v2169, %v2283
  %vm2287 = vcmask 9216
  %2288 = vst.msk [vmem:[%s25] sm:$0x3] %vm2287, %v2286
  // Predicated region
  $region102: #{critic_forward.1} parent=0 // pred_check
    _
  $region103: #{critic_forward.1} parent=0 // pred_check_branch
    %2290 = sbr.rel (0) target = $region105
  $region104: #{critic_forward.1} parent=0 // pred_region
    _
  $region105: #{critic_forward.1} parent=0 // pred_fallthru
    _
  // Predicated region
  $region106: #{critic_forward.1} parent=0 // pred_check
    _
  $region107: #{critic_forward.1} parent=0 // pred_check_branch
    %2292 = sbr.rel (0) target = $region109
  $region108: #{critic_forward.1} parent=0 // pred_region
    _
  $region109: #{critic_forward.1} parent=0 // pred_fallthru
    _

</llo_original>
